<compile_context>
chip_gen: v5e
topology: v5e:2x2
jax: 0.10.0
libtpu: 0.0.40
codegen_flags: <defaults>
</compile_context>

<pallas_src>
import jax
import jax.numpy as jnp
from jax.experimental import pallas as pl
from jax.experimental.pallas import tpu as pltpu

IN_DIM = 512
HIDDEN_DIM = 256
LANE = 128  # classes padded to one full lane width inside the kernel


def _round_up(n, m):
    return ((n + m - 1) // m) * m


def clip_classifier_kernel(x_ref, w1_ref, b1_ref, w2_ref, b2_ref, o_ref):
    # f32 -> bf16 cast in-kernel (hidden under the x DMA); never feed f32 to the MXU.
    x = x_ref[...].astype(jnp.bfloat16)
    # hidden = relu(x @ W1 + b1): bf16 MXU operands, f32 accumulate / elementwise.
    h = jnp.dot(x, w1_ref[...], preferred_element_type=jnp.float32)
    h = jnp.maximum(h + b1_ref[...], 0.0)
    # logits = h @ W2 + b2 ; W2/b2 lane-padded to 128 classes (pad bias = -1e30).
    logits = jnp.dot(h.astype(jnp.bfloat16), w2_ref[...],
                     preferred_element_type=jnp.float32)
    logits = logits + b2_ref[...]
    # Softmax over the padded class axis; padded columns underflow to exactly 0.
    m = jnp.max(logits, axis=-1, keepdims=True)
    e = jnp.exp(logits - m)
    denom = jnp.sum(e, axis=-1, keepdims=True)
    p = e * pl.reciprocal(denom, approx=True)  # EUP reciprocal (separate slot, ~free)
    # Store only the real classes -> output HBM traffic is num_classes wide.
    o_ref[...] = p[:, :o_ref.shape[-1]].astype(o_ref.dtype)


def _build_call(B, tile_b, num_classes, padded_c, x_itemsize, single_buffer_weights):
    grid = (pl.cdiv(B, tile_b),)

    resident = {}
    if single_buffer_weights:
        # Constant index_map -> weights never re-fetched; a 2nd pipeline buffer is dead VMEM.
        resident = dict(pipeline_mode=pl.Buffered(1))

    in_specs = [
        pl.BlockSpec((tile_b, IN_DIM), lambda i: (i, 0)),                    # x: batch-tiled
        pl.BlockSpec((IN_DIM, HIDDEN_DIM), lambda i: (0, 0), **resident),    # W1: resident
        pl.BlockSpec((1, HIDDEN_DIM), lambda i: (0, 0), **resident),         # b1: resident
        pl.BlockSpec((HIDDEN_DIM, padded_c), lambda i: (0, 0), **resident),  # W2: resident
        pl.BlockSpec((1, padded_c), lambda i: (0, 0), **resident),           # b2: resident
    ]
    # Legal: last dim (num_classes) equals the full output extent.
    out_specs = pl.BlockSpec((tile_b, num_classes), lambda i: (i, 0))

    # VMEM budget: double-buffered x/out tiles + resident weights + f32 intermediates,
    # with 1.5x headroom; capped at 48 MiB so it is safe on v7x (64 MiB physical).
    vmem_est = (2 * tile_b * IN_DIM * x_itemsize
                + 2 * tile_b * num_classes * 4
                + IN_DIM * HIDDEN_DIM * 2 + HIDDEN_DIM * 4
                + HIDDEN_DIM * padded_c * 2 + padded_c * 4
                + tile_b * (HIDDEN_DIM * 4 + HIDDEN_DIM * 2 + 4 * padded_c * 4))
    vmem_limit = int(min(48 * 1024 * 1024,
                         max(16 * 1024 * 1024, int(1.5 * vmem_est))))

    cost = pl.CostEstimate(
        flops=2 * B * (IN_DIM * HIDDEN_DIM + HIDDEN_DIM * padded_c),
        transcendentals=B * padded_c,
        bytes_accessed=(B * IN_DIM * x_itemsize                     # x (no wrapper cast pass)
                        + IN_DIM * HIDDEN_DIM * 2 + HIDDEN_DIM * 4  # W1/b1
                        + HIDDEN_DIM * padded_c * 2 + padded_c * 4  # W2/b2 (padded)
                        + B * num_classes * 4),                     # output (narrow, f32)
    )

    return pl.pallas_call(
        clip_classifier_kernel,
        out_shape=jax.ShapeDtypeStruct((B, num_classes), jnp.float32),
        grid_spec=pltpu.PrefetchScalarGridSpec(
            num_scalar_prefetch=0,
            grid=grid,
            in_specs=in_specs,
            out_specs=out_specs,
        ),
        compiler_params=pltpu.CompilerParams(
            dimension_semantics=("parallel",),
            vmem_limit_bytes=vmem_limit,
        ),
        cost_estimate=cost,
    )


def clip_classifier_forward(x, w1, b1, w2, b2, *, max_tile_b=2048):
    """x: [B, 512] (f32 or bf16). w1: [512, 256], b1: [256], w2: [256, C], b2: [C].
    Returns [B, C] float32 softmax probabilities (rows sum to 1 to ~1e-3)."""
    B = x.shape[0]
    num_classes = w2.shape[1]

    # Batch tiling: no padding of x.  One full-extent block when a single tile suffices;
    # otherwise balanced 8-multiple tiles, ragged last block handled by Pallas.
    n_tiles = pl.cdiv(B, max_tile_b)
    if n_tiles <= 1:
        tile_b = B
    else:
        tile_b = _round_up(pl.cdiv(B, n_tiles), 8)

    # Weight-sized operand prep only (tiny, one-time): bf16 MXU weights, f32 biases,
    # class dim lane-padded to 128 with -1e30 bias so padded probabilities underflow to 0.
    w1b = w1.astype(jnp.bfloat16)
    b1f = jnp.reshape(b1, (1, HIDDEN_DIM)).astype(jnp.float32)
    padded_c = _round_up(max(num_classes, LANE), LANE)
    w2p = jnp.zeros((HIDDEN_DIM, padded_c), jnp.bfloat16).at[:, :num_classes].set(
        w2.astype(jnp.bfloat16))
    b2p = jnp.full((1, padded_c), -1e30, jnp.float32).at[:, :num_classes].set(
        jnp.reshape(b2, (1, num_classes)).astype(jnp.float32))

    x_itemsize = x.dtype.itemsize
    try:
        call = _build_call(B, tile_b, num_classes, padded_c, x_itemsize, True)
        return call(x, w1b, b1f, w2p, b2p)
    except Exception:
        # Fallback if this JAX build rejects pipeline_mode=pl.Buffered(1) on BlockSpec.
        call = _build_call(B, tile_b, num_classes, padded_c, x_itemsize, False)
        return call(x, w1b, b1f, w2p, b2p)


def init_params(key, in_dim=IN_DIM, hidden_dim=HIDDEN_DIM, num_classes=8):
    k1, k2, k3, k4 = jax.random.split(key, 4)
    # Weights stored as (in, out) so the kernel computes x @ W (transposed vs nn.Linear).
    w1 = jax.random.normal(k1, (in_dim, hidden_dim), jnp.float32) * 0.02
    b1 = jax.random.normal(k2, (hidden_dim,), jnp.float32) * 0.02
    w2 = jax.random.normal(k3, (hidden_dim, num_classes), jnp.float32) * 0.02
    b2 = jax.random.normal(k4, (num_classes,), jnp.float32) * 0.02
    return w1, b1, w2, b2


def reference_forward_f32(x, w1, b1, w2, b2):
    h = jnp.maximum(x @ w1 + b1[None, :], 0.0)
    logits = h @ w2 + b2[None, :]
    return jax.nn.softmax(logits, axis=1)


def reference_forward_bf16(x, w1, b1, w2, b2):
    # Mirrors the kernel's bf16 MXU operands / f32 accumulation.
    h = jnp.dot(x.astype(jnp.bfloat16), w1.astype(jnp.bfloat16),
                preferred_element_type=jnp.float32)
    h = jnp.maximum(h + b1[None, :].astype(jnp.float32), 0.0)
    logits = jnp.dot(h.astype(jnp.bfloat16), w2.astype(jnp.bfloat16),
                     preferred_element_type=jnp.float32)
    logits = logits + b2[None, :].astype(jnp.float32)
    return jax.nn.softmax(logits, axis=1)


if __name__ == "__main__":
    key = jax.random.PRNGKey(0)
    kx, kp, kx2 = jax.random.split(key, 3)

    NC = 8
    w1, b1, w2, b2 = init_params(kp, IN_DIM, HIDDEN_DIM, NC)

    # Small test consistent with the module: batch=4, features=512 (single full-extent block).
    B = 4
    x = jax.random.normal(kx, (B, IN_DIM), jnp.float32)
    out = jax.block_until_ready(clip_classifier_forward(x, w1, b1, w2, b2))
    assert out.shape == (B, NC)
    ref_bf16 = reference_forward_bf16(x, w1, b1, w2, b2)
    ref_f32 = reference_forward_f32(x, w1, b1, w2, b2)
    assert jnp.allclose(out, ref_bf16, atol=2e-3), "mismatch vs bf16-mirrored reference"
    assert jnp.allclose(out, ref_f32, atol=3e-2), "mismatch vs f32 reference"
    assert jnp.allclose(jnp.sum(out, axis=1), 1.0, atol=1e-2)

    # Multi-tile ragged path: B=300, max_tile_b=128 -> grid=3, ragged last block, no padding.
    B2 = 300
    x2 = jax.random.normal(kx2, (B2, IN_DIM), jnp.float32)
    out2 = jax.block_until_ready(
        clip_classifier_forward(x2, w1, b1, w2, b2, max_tile_b=128))
    assert out2.shape == (B2, NC)
    assert jnp.allclose(out2, reference_forward_bf16(x2, w1, b1, w2, b2), atol=2e-3)
    assert jnp.allclose(jnp.sum(out2, axis=1), 1.0, atol=1e-2)

    print("KERNEL_OK")
</pallas_src>

<mosaic_0001>
module attributes {stable_mosaic.version = 11 : i64} {
  func.func @clip_classifier_kernel(%arg0: i32, %arg1: memref<4x512xf32, #tpu.memory_space<vmem>>, %arg2: memref<512x256xbf16, #tpu.memory_space<vmem>>, %arg3: memref<1x256xf32, #tpu.memory_space<vmem>>, %arg4: memref<256x128xbf16, #tpu.memory_space<vmem>>, %arg5: memref<1x128xf32, #tpu.memory_space<vmem>>, %arg6: memref<4x8xf32, #tpu.memory_space<vmem>>) attributes {dimension_semantics = [#tpu.dimension_semantics<parallel>], iteration_bounds = array<i64: 1>, scalar_prefetch = 0 : i64, scratch_operands = 0 : i64, tpu.core_type = #tpu.core_type<tc>, window_params = [{transform_indices = @transform_0, window_bounds = array<i64: 4, 512>}, {pipeline_mode = #tpu.pipeline_mode<synchronous>, transform_indices = @transform_1, window_bounds = array<i64: 512, 256>}, {pipeline_mode = #tpu.pipeline_mode<synchronous>, transform_indices = @transform_2, window_bounds = array<i64: 1, 256>}, {pipeline_mode = #tpu.pipeline_mode<synchronous>, transform_indices = @transform_3, window_bounds = array<i64: 256, 128>}, {pipeline_mode = #tpu.pipeline_mode<synchronous>, transform_indices = @transform_4, window_bounds = array<i64: 1, 128>}, {transform_indices = @transform_5, window_bounds = array<i64: 4, 8>}]} {
    %c0 = arith.constant 0 : index
    %c0_0 = arith.constant 0 : index
    %0 = vector.load %arg1[%c0, %c0_0] : memref<4x512xf32, #tpu.memory_space<vmem>>, vector<4x512xf32>
    %1 = arith.truncf %0 : vector<4x512xf32> to vector<4x512xbf16>
    %c0_1 = arith.constant 0 : index
    %c0_2 = arith.constant 0 : index
    %2 = vector.load %arg2[%c0_1, %c0_2] : memref<512x256xbf16, #tpu.memory_space<vmem>>, vector<512x256xbf16>
    %cst = arith.constant dense<0.000000e+00> : vector<4x256xf32>
    %3 = tpu.matmul %1, %2, %cst {dimension_numbers = #tpu.dot_dimension_numbers<[1], [0], [0], [1], [0, 0, 1, 1], [], []>} : vector<4x512xbf16>, vector<512x256xbf16>, vector<4x256xf32> -> vector<4x256xf32>
    %c0_3 = arith.constant 0 : index
    %c0_4 = arith.constant 0 : index
    %4 = vector.load %arg3[%c0_3, %c0_4] : memref<1x256xf32, #tpu.memory_space<vmem>>, vector<1x256xf32>
    %5 = vector.broadcast %4 : vector<1x256xf32> to vector<4x256xf32>
    %6 = arith.addf %3, %5 : vector<4x256xf32>
    %cst_5 = arith.constant 0.000000e+00 : f32
    %7 = vector.broadcast %cst_5 : f32 to vector<4x256xf32>
    %8 = arith.maximumf %6, %7 : vector<4x256xf32>
    %9 = arith.truncf %8 : vector<4x256xf32> to vector<4x256xbf16>
    %c0_6 = arith.constant 0 : index
    %c0_7 = arith.constant 0 : index
    %10 = vector.load %arg4[%c0_6, %c0_7] : memref<256x128xbf16, #tpu.memory_space<vmem>>, vector<256x128xbf16>
    %cst_8 = arith.constant dense<0.000000e+00> : vector<4x128xf32>
    %11 = tpu.matmul %9, %10, %cst_8 {dimension_numbers = #tpu.dot_dimension_numbers<[1], [0], [0], [1], [0, 0, 1, 1], [], []>} : vector<4x256xbf16>, vector<256x128xbf16>, vector<4x128xf32> -> vector<4x128xf32>
    %c0_9 = arith.constant 0 : index
    %c0_10 = arith.constant 0 : index
    %12 = vector.load %arg5[%c0_9, %c0_10] : memref<1x128xf32, #tpu.memory_space<vmem>>, vector<1x128xf32>
    %13 = vector.broadcast %12 : vector<1x128xf32> to vector<4x128xf32>
    %14 = arith.addf %11, %13 : vector<4x128xf32>
    %cst_11 = arith.constant dense<0xFF800000> : vector<4xf32>
    %15 = vector.multi_reduction <maximumf>, %14, %cst_11 [1] : vector<4x128xf32> to vector<4xf32>
    %16 = vector.shape_cast %15 : vector<4xf32> to vector<4x1xf32>
    %17 = vector.broadcast %16 : vector<4x1xf32> to vector<4x128xf32>
    %18 = arith.subf %14, %17 : vector<4x128xf32>
    %19 = math.exp %18 : vector<4x128xf32>
    %cst_12 = arith.constant dense<0.000000e+00> : vector<4xf32>
    %20 = vector.multi_reduction <add>, %19, %cst_12 [1] : vector<4x128xf32> to vector<4xf32>
    %21 = vector.shape_cast %20 : vector<4xf32> to vector<4x1xf32>
    %22 = tpu.reciprocal %21 {approx = true} : vector<4x1xf32> -> vector<4x1xf32>
    %23 = vector.broadcast %22 : vector<4x1xf32> to vector<4x128xf32>
    %24 = arith.mulf %19, %23 : vector<4x128xf32>
    %25 = vector.extract_strided_slice %24 {offsets = [0, 0], sizes = [4, 8], strides = [1, 1]} : vector<4x128xf32> to vector<4x8xf32>
    %c0_13 = arith.constant 0 : index
    %c0_14 = arith.constant 0 : index
    %26 = vector.load %arg6[%c0_13, %c0_14] : memref<4x8xf32, #tpu.memory_space<vmem>>, vector<4x8xf32>
    tpu.vector_store %arg6[%c0_13, %c0_14], %25 {strides = array<i32>} : memref<4x8xf32, #tpu.memory_space<vmem>>, vector<4x8xf32>,
    return
  }
  func.func @transform_0(%arg0: i32) -> (i32, i32) {
    %c0_i32 = arith.constant 0 : i32
    %c0_i32_0 = arith.constant 0 : i32
    return %arg0, %c0_i32 : i32, i32
  }
  func.func @transform_1(%arg0: i32) -> (i32, i32) {
    %c0_i32 = arith.constant 0 : i32
    %c0_i32_0 = arith.constant 0 : i32
    %c0_i32_1 = arith.constant 0 : i32
    return %c0_i32, %c0_i32_0 : i32, i32
  }
  func.func @transform_2(%arg0: i32) -> (i32, i32) {
    %c0_i32 = arith.constant 0 : i32
    %c0_i32_0 = arith.constant 0 : i32
    %c0_i32_1 = arith.constant 0 : i32
    return %c0_i32, %c0_i32_0 : i32, i32
  }
  func.func @transform_3(%arg0: i32) -> (i32, i32) {
    %c0_i32 = arith.constant 0 : i32
    %c0_i32_0 = arith.constant 0 : i32
    %c0_i32_1 = arith.constant 0 : i32
    return %c0_i32, %c0_i32_0 : i32, i32
  }
  func.func @transform_4(%arg0: i32) -> (i32, i32) {
    %c0_i32 = arith.constant 0 : i32
    %c0_i32_0 = arith.constant 0 : i32
    %c0_i32_1 = arith.constant 0 : i32
    return %c0_i32, %c0_i32_0 : i32, i32
  }
  func.func @transform_5(%arg0: i32) -> (i32, i32) {
    %c0_i32 = arith.constant 0 : i32
    %c0_i32_0 = arith.constant 0 : i32
    return %arg0, %c0_i32 : i32, i32
  }
}

module attributes {stable_mosaic.version = 11 : i64} {
  func.func @clip_classifier_kernel(%arg0: i32, %arg1: memref<4x512xf32, #tpu.memory_space<vmem>>, %arg2: memref<512x256xbf16, #tpu.memory_space<vmem>>, %arg3: memref<1x256xf32, #tpu.memory_space<vmem>>, %arg4: memref<256x128xbf16, #tpu.memory_space<vmem>>, %arg5: memref<1x128xf32, #tpu.memory_space<vmem>>, %arg6: memref<4x8xf32, #tpu.memory_space<vmem>>) attributes {dimension_semantics = [#tpu.dimension_semantics<parallel>], iteration_bounds = array<i64: 1>, scalar_prefetch = 0 : i64, scratch_operands = 0 : i64, tpu.core_type = #tpu.core_type<tc>, window_params = [{transform_indices = @transform_0, window_bounds = array<i64: 4, 512>}, {pipeline_mode = #tpu.pipeline_mode<synchronous>, transform_indices = @transform_1, window_bounds = array<i64: 512, 256>}, {pipeline_mode = #tpu.pipeline_mode<synchronous>, transform_indices = @transform_2, window_bounds = array<i64: 1, 256>}, {pipeline_mode = #tpu.pipeline_mode<synchronous>, transform_indices = @transform_3, window_bounds = array<i64: 256, 128>}, {pipeline_mode = #tpu.pipeline_mode<synchronous>, transform_indices = @transform_4, window_bounds = array<i64: 1, 128>}, {transform_indices = @transform_5, window_bounds = array<i64: 4, 8>}]} {
    %c0 = arith.constant 0 : index
    %c0_0 = arith.constant 0 : index
    %0 = vector.load %arg1[%c0, %c0_0] : memref<4x512xf32, #tpu.memory_space<vmem>>, vector<4x512xf32>
    %1 = arith.truncf %0 : vector<4x512xf32> to vector<4x512xbf16>
    %c0_1 = arith.constant 0 : index
    %c0_2 = arith.constant 0 : index
    %2 = vector.load %arg2[%c0_1, %c0_2] : memref<512x256xbf16, #tpu.memory_space<vmem>>, vector<512x256xbf16>
    %cst = arith.constant dense<0.000000e+00> : vector<4x256xf32>
    %3 = tpu.matmul %1, %2, %cst {dimension_numbers = #tpu.dot_dimension_numbers<[1], [0], [0], [1], [0, 0, 1, 1], [], []>} : vector<4x512xbf16>, vector<512x256xbf16>, vector<4x256xf32> -> vector<4x256xf32>
    %c0_3 = arith.constant 0 : index
    %c0_4 = arith.constant 0 : index
    %4 = vector.load %arg3[%c0_3, %c0_4] : memref<1x256xf32, #tpu.memory_space<vmem>>, vector<1x256xf32>
    %5 = vector.broadcast %4 : vector<1x256xf32> to vector<4x256xf32>
    %6 = arith.addf %3, %5 : vector<4x256xf32>
    %cst_5 = arith.constant 0.000000e+00 : f32
    %7 = vector.broadcast %cst_5 : f32 to vector<4x256xf32>
    %8 = arith.maximumf %6, %7 : vector<4x256xf32>
    %9 = arith.truncf %8 : vector<4x256xf32> to vector<4x256xbf16>
    %c0_6 = arith.constant 0 : index
    %c0_7 = arith.constant 0 : index
    %10 = vector.load %arg4[%c0_6, %c0_7] : memref<256x128xbf16, #tpu.memory_space<vmem>>, vector<256x128xbf16>
    %cst_8 = arith.constant dense<0.000000e+00> : vector<4x128xf32>
    %11 = tpu.matmul %9, %10, %cst_8 {dimension_numbers = #tpu.dot_dimension_numbers<[1], [0], [0], [1], [0, 0, 1, 1], [], []>} : vector<4x256xbf16>, vector<256x128xbf16>, vector<4x128xf32> -> vector<4x128xf32>
    %c0_9 = arith.constant 0 : index
    %c0_10 = arith.constant 0 : index
    %12 = vector.load %arg5[%c0_9, %c0_10] : memref<1x128xf32, #tpu.memory_space<vmem>>, vector<1x128xf32>
    %13 = vector.broadcast %12 : vector<1x128xf32> to vector<4x128xf32>
    %14 = arith.addf %11, %13 : vector<4x128xf32>
    %cst_11 = arith.constant dense<0xFF800000> : vector<4xf32>
    %15 = vector.multi_reduction <maximumf>, %14, %cst_11 [1] : vector<4x128xf32> to vector<4xf32>
    %16 = vector.shape_cast %15 : vector<4xf32> to vector<4x1xf32>
    %17 = vector.broadcast %16 : vector<4x1xf32> to vector<4x128xf32>
    %18 = arith.subf %14, %17 : vector<4x128xf32>
    %19 = math.exp %18 : vector<4x128xf32>
    %cst_12 = arith.constant dense<0.000000e+00> : vector<4xf32>
    %20 = vector.multi_reduction <add>, %19, %cst_12 [1] : vector<4x128xf32> to vector<4xf32>
    %21 = vector.shape_cast %20 : vector<4xf32> to vector<4x1xf32>
    %22 = tpu.reciprocal %21 {approx = true} : vector<4x1xf32> -> vector<4x1xf32>
    %23 = vector.broadcast %22 : vector<4x1xf32> to vector<4x128xf32>
    %24 = arith.mulf %19, %23 : vector<4x128xf32>
    %25 = vector.extract_strided_slice %24 {offsets = [0, 0], sizes = [4, 8], strides = [1, 1]} : vector<4x128xf32> to vector<4x8xf32>
    %c0_13 = arith.constant 0 : index
    %c0_14 = arith.constant 0 : index
    %26 = vector.load %arg6[%c0_13, %c0_14] : memref<4x8xf32, #tpu.memory_space<vmem>>, vector<4x8xf32>
    tpu.vector_store %arg6[%c0_13, %c0_14], %25 {strides = array<i32>} : memref<4x8xf32, #tpu.memory_space<vmem>>, vector<4x8xf32>,
    return
  }
  func.func @transform_0(%arg0: i32) -> (i32, i32) {
    %c0_i32 = arith.constant 0 : i32
    %c0_i32_0 = arith.constant 0 : i32
    return %arg0, %c0_i32 : i32, i32
  }
  func.func @transform_1(%arg0: i32) -> (i32, i32) {
    %c0_i32 = arith.constant 0 : i32
    %c0_i32_0 = arith.constant 0 : i32
    %c0_i32_1 = arith.constant 0 : i32
    return %c0_i32, %c0_i32_0 : i32, i32
  }
  func.func @transform_2(%arg0: i32) -> (i32, i32) {
    %c0_i32 = arith.constant 0 : i32
    %c0_i32_0 = arith.constant 0 : i32
    %c0_i32_1 = arith.constant 0 : i32
    return %c0_i32, %c0_i32_0 : i32, i32
  }
  func.func @transform_3(%arg0: i32) -> (i32, i32) {
    %c0_i32 = arith.constant 0 : i32
    %c0_i32_0 = arith.constant 0 : i32
    %c0_i32_1 = arith.constant 0 : i32
    return %c0_i32, %c0_i32_0 : i32, i32
  }
  func.func @transform_4(%arg0: i32) -> (i32, i32) {
    %c0_i32 = arith.constant 0 : i32
    %c0_i32_0 = arith.constant 0 : i32
    %c0_i32_1 = arith.constant 0 : i32
    return %c0_i32, %c0_i32_0 : i32, i32
  }
  func.func @transform_5(%arg0: i32) -> (i32, i32) {
    %c0_i32 = arith.constant 0 : i32
    %c0_i32_0 = arith.constant 0 : i32
    return %arg0, %c0_i32 : i32, i32
  }
}

</mosaic_0001>

<llo_original>
// kernel: tpu_custom_call.1
$region0: #{tpu_custom_call.1}
  #allocation0 [shape = 'u32[]', space=smem, size = 0x4, offset = 0x4, fixed_abs, tag = 'smem constant byte address 0x4 - core index']
  #allocation1 [shape = 'u32[72,128]{1,0:T(1,128)}', space=vmem, size = 0x9000, scoped, tag = 'internal scratch']
  %s0 = inlined_call_operand.hbm [shape: f32[4,512], index: 0, kind: input, shape index: {}]
  %s1 = inlined_call_operand.hbm [shape: bf16[512,256], index: 1, kind: input, shape index: {}]
  %s2 = inlined_call_operand.hbm [shape: f32[1,256], index: 2, kind: input, shape index: {}]
  %s3 = inlined_call_operand.hbm [shape: bf16[256,128], index: 3, kind: input, shape index: {}]
  %s4 = inlined_call_operand.vmem [shape: f32[1,128], index: 4, kind: input, shape index: {}]
  %s5 = inlined_call_operand.hbm [shape: f32[4,8], index: 5, kind: output, shape index: {}]
  %s6 = sld [smem:[#allocation0]]
  $region46: #{tpu_custom_call.1} parent=0
    _
  %s8 = ssub.s32 1, %s6
  %s9 = scalar_select 0, %s8, %s6
  $region1: #{tpu_custom_call.1} parent=0
    #allocation2 [shape = 'u8[8192]{0}', space=vmem, size = 0x2000, scoped, tag = 'input window, operand 0, single buffered']
    #allocation3 [shape = 's32[1]{0}', space=sflag, size = 0x4, scoped, tag = 'scoped memory for tpu_custom_call.1']
    #allocation4 [shape = 's32[1]{0}', space=sflag, size = 0x4, scoped, tag = 'scoped memory for tpu_custom_call.1']
    #allocation5 [shape = 'u8[262144]{0}', space=vmem, size = 0x40000, scoped, tag = 'input window, operand 1, single buffered']
    #allocation6 [shape = 's32[1]{0}', space=sflag, size = 0x4, scoped, tag = 'scoped memory for tpu_custom_call.1']
    #allocation7 [shape = 'u8[1024]{0}', space=vmem, size = 0x400, scoped, tag = 'input window, operand 2, single buffered']
    #allocation8 [shape = 'u8[65536]{0}', space=vmem, size = 0x10000, scoped, tag = 'input window, operand 3, single buffered']
    #allocation9 [shape = 's32[1]{0}', space=sflag, size = 0x4, scoped, tag = 'scoped memory for tpu_custom_call.1']
    #allocation10 [shape = 'u8[2048]{0}', space=vmem, size = 0x800, scoped, tag = 'output window, operand 0, single buffered']
    %10 = vsyncpa [#allocation3], 0
    %11 = vsyncpa [#allocation6], 0
    %12 = vsyncpa [#allocation9], 0
    %13 = vsyncpa [#allocation4], 0
    // Predicated region
    $region2: #{tpu_custom_call.1} parent=1 // pred_check
      _
    $region3: #{tpu_custom_call.1} parent=1 // pred_check_branch
      %15 = sbr.rel (0) target = $region5
    $region4: #{tpu_custom_call.1} parent=1 // pred_region
      %17 = vsyncadd [#allocation3], 0
      %s19 = sshll.u32 %s0, 4
      %s20 = int_to_ptr.hbm [resolvable:$true] %s19
      %s21 = sshll.u32 [#allocation2], 4
      %s22 = int_to_ptr.vmem [resolvable:$true] %s21
      %24 = dma.hbm_to_vmem [thread:$0]  %s20, 256, %s22, [#allocation3]
    $region5: #{tpu_custom_call.1} parent=1 // pred_fallthru
      _
    // Predicated region
    $region6: #{tpu_custom_call.1} parent=1 // pred_check
      _
    $region7: #{tpu_custom_call.1} parent=1 // pred_check_branch
      %26 = sbr.rel (0) target = $region9
    $region8: #{tpu_custom_call.1} parent=1 // pred_region
      %28 = vsyncadd [#allocation6], 0
      %s29 = sshll.u32 %s1, 4
      %s30 = int_to_ptr.hbm [resolvable:$true] %s29
      %s31 = sshll.u32 [#allocation5], 4
      %s32 = int_to_ptr.vmem [resolvable:$true] %s31
      %37 = dma.hbm_to_vmem [thread:$0]  %s30, 8192, %s32, [#allocation6], 128, 128, 8
    $region9: #{tpu_custom_call.1} parent=1 // pred_fallthru
      _
    // Predicated region
    $region10: #{tpu_custom_call.1} parent=1 // pred_check
      _
    $region11: #{tpu_custom_call.1} parent=1 // pred_check_branch
      %39 = sbr.rel (0) target = $region13
    $region12: #{tpu_custom_call.1} parent=1 // pred_region
      %41 = vsyncadd [#allocation6], 0
      %s43 = sshll.u32 %s2, 4
      %s44 = int_to_ptr.hbm [resolvable:$true] %s43
      %s45 = sshll.u32 [#allocation7], 4
      %s46 = int_to_ptr.vmem [resolvable:$true] %s45
      %48 = dma.hbm_to_vmem [thread:$0]  %s44, 32, %s46, [#allocation6]
    $region13: #{tpu_custom_call.1} parent=1 // pred_fallthru
      _
    // Predicated region
    $region14: #{tpu_custom_call.1} parent=1 // pred_check
      _
    $region15: #{tpu_custom_call.1} parent=1 // pred_check_branch
      %50 = sbr.rel (0) target = $region17
    $region16: #{tpu_custom_call.1} parent=1 // pred_region
      %52 = vsyncadd [#allocation9], 0
      %s53 = sshll.u32 %s3, 4
      %s54 = int_to_ptr.hbm [resolvable:$true] %s53
      %s55 = sshll.u32 [#allocation8], 4
      %s56 = int_to_ptr.vmem [resolvable:$true] %s55
      %61 = dma.hbm_to_vmem [thread:$0]  %s54, 2048, %s56, [#allocation9], 64, 64, 4
    $region17: #{tpu_custom_call.1} parent=1 // pred_fallthru
      _
    // Predicated region
    $region18: #{tpu_custom_call.1} parent=1 // pred_check
      _
    $region19: #{tpu_custom_call.1} parent=1 // pred_check_branch
      %63 = sbr.rel (0) target = $region21
    $region20: #{tpu_custom_call.1} parent=1 // pred_region
      _
    $region21: #{tpu_custom_call.1} parent=1 // pred_fallthru
      _
    // Predicated region
    $region22: #{tpu_custom_call.1} parent=1 // pred_check
      _
    $region23: #{tpu_custom_call.1} parent=1 // pred_check_branch
      %65 = sbr.rel (0) target = $region25
    $region24: #{tpu_custom_call.1} parent=1 // pred_region
      %67 = dma.done [#allocation3], 256
    $region25: #{tpu_custom_call.1} parent=1 // pred_fallthru
      _
    // Predicated region
    $region26: #{tpu_custom_call.1} parent=1 // pred_check
      _
    $region27: #{tpu_custom_call.1} parent=1 // pred_check_branch
      %69 = sbr.rel (0) target = $region29
    $region28: #{tpu_custom_call.1} parent=1 // pred_region
      %71 = dma.done [#allocation6], 8192
    $region29: #{tpu_custom_call.1} parent=1 // pred_fallthru
      _
    // Predicated region
    $region30: #{tpu_custom_call.1} parent=1 // pred_check
      _
    $region31: #{tpu_custom_call.1} parent=1 // pred_check_branch
      %73 = sbr.rel (0) target = $region33
    $region32: #{tpu_custom_call.1} parent=1 // pred_region
      %75 = dma.done [#allocation6], 32
    $region33: #{tpu_custom_call.1} parent=1 // pred_fallthru
      _
    // Predicated region
    $region34: #{tpu_custom_call.1} parent=1 // pred_check
      _
    $region35: #{tpu_custom_call.1} parent=1 // pred_check_branch
      %77 = sbr.rel (0) target = $region37
    $region36: #{tpu_custom_call.1} parent=1 // pred_region
      %79 = dma.done [#allocation9], 2048
    $region37: #{tpu_custom_call.1} parent=1 // pred_fallthru
      _
    %v80 = vld [vmem:[#allocation2] sm:$0xff]
    %v81 = vld [vmem:[#allocation2 + $0x8] sm:$0xff]
    %84 = vst [vmem:[#allocation1] ss:$2 sm:$0xff] %v80
    %s85 = scalar_lea.vmem [#allocation1], 16
    %86 = vst [vmem:[%s85] ss:$2 sm:$0xff] %v81
    %v87 = vld.sshfl [vmem:[#allocation1] sm:$0xff pattern:$0x75316420]
    %v88 = vld.sshfl [vmem:[#allocation1 + $0x8] sm:$0xff pattern:$0x75316420]
    %v89 = vld.sshfl [vmem:[#allocation1 + $0x10] sm:$0xff pattern:$0x75316420]
    %v90 = vld.sshfl [vmem:[#allocation1 + $0x18] sm:$0xff pattern:$0x75316420]
    %v95 = vpack.c.bf16 %v87, %v87
    %v96 = vpack.c.bf16 %v88, %v88
    %v97 = vpack.c.bf16 %v89, %v89
    %v98 = vpack.c.bf16 %v90, %v90
    %v99 = vld [vmem:[#allocation5] sm:$0xff]
    %v100 = vld [vmem:[#allocation5 + $0x8] sm:$0xff]
    %v101 = vld [vmem:[#allocation5 + $0x10] sm:$0xff]
    %v102 = vld [vmem:[#allocation5 + $0x18] sm:$0xff]
    %v103 = vld [vmem:[#allocation5 + $0x20] sm:$0xff]
    %v104 = vld [vmem:[#allocation5 + $0x28] sm:$0xff]
    %v105 = vld [vmem:[#allocation5 + $0x30] sm:$0xff]
    %v106 = vld [vmem:[#allocation5 + $0x38] sm:$0xff]
    %v107 = vld [vmem:[#allocation5 + $0x40] sm:$0xff]
    %v108 = vld [vmem:[#allocation5 + $0x48] sm:$0xff]
    %v109 = vld [vmem:[#allocation5 + $0x50] sm:$0xff]
    %v110 = vld [vmem:[#allocation5 + $0x58] sm:$0xff]
    %v111 = vld [vmem:[#allocation5 + $0x60] sm:$0xff]
    %v112 = vld [vmem:[#allocation5 + $0x68] sm:$0xff]
    %v113 = vld [vmem:[#allocation5 + $0x70] sm:$0xff]
    %v114 = vld [vmem:[#allocation5 + $0x78] sm:$0xff]
    %v115 = vld [vmem:[#allocation5 + $0x80] sm:$0xff]
    %v116 = vld [vmem:[#allocation5 + $0x88] sm:$0xff]
    %v117 = vld [vmem:[#allocation5 + $0x90] sm:$0xff]
    %v118 = vld [vmem:[#allocation5 + $0x98] sm:$0xff]
    %v119 = vld [vmem:[#allocation5 + $0xa0] sm:$0xff]
    %v120 = vld [vmem:[#allocation5 + $0xa8] sm:$0xff]
    %v121 = vld [vmem:[#allocation5 + $0xb0] sm:$0xff]
    %v122 = vld [vmem:[#allocation5 + $0xb8] sm:$0xff]
    %v123 = vld [vmem:[#allocation5 + $0xc0] sm:$0xff]
    %v124 = vld [vmem:[#allocation5 + $0xc8] sm:$0xff]
    %v125 = vld [vmem:[#allocation5 + $0xd0] sm:$0xff]
    %v126 = vld [vmem:[#allocation5 + $0xd8] sm:$0xff]
    %v127 = vld [vmem:[#allocation5 + $0xe0] sm:$0xff]
    %v128 = vld [vmem:[#allocation5 + $0xe8] sm:$0xff]
    %v129 = vld [vmem:[#allocation5 + $0xf0] sm:$0xff]
    %v130 = vld [vmem:[#allocation5 + $0xf8] sm:$0xff]
    %v131 = vld [vmem:[#allocation5 + $0x100] sm:$0xff]
    %v132 = vld [vmem:[#allocation5 + $0x108] sm:$0xff]
    %v133 = vld [vmem:[#allocation5 + $0x110] sm:$0xff]
    %v134 = vld [vmem:[#allocation5 + $0x118] sm:$0xff]
    %v135 = vld [vmem:[#allocation5 + $0x120] sm:$0xff]
    %v136 = vld [vmem:[#allocation5 + $0x128] sm:$0xff]
    %v137 = vld [vmem:[#allocation5 + $0x130] sm:$0xff]
    %v138 = vld [vmem:[#allocation5 + $0x138] sm:$0xff]
    %v139 = vld [vmem:[#allocation5 + $0x140] sm:$0xff]
    %v140 = vld [vmem:[#allocation5 + $0x148] sm:$0xff]
    %v141 = vld [vmem:[#allocation5 + $0x150] sm:$0xff]
    %v142 = vld [vmem:[#allocation5 + $0x158] sm:$0xff]
    %v143 = vld [vmem:[#allocation5 + $0x160] sm:$0xff]
    %v144 = vld [vmem:[#allocation5 + $0x168] sm:$0xff]
    %v145 = vld [vmem:[#allocation5 + $0x170] sm:$0xff]
    %v146 = vld [vmem:[#allocation5 + $0x178] sm:$0xff]
    %v147 = vld [vmem:[#allocation5 + $0x180] sm:$0xff]
    %v148 = vld [vmem:[#allocation5 + $0x188] sm:$0xff]
    %v149 = vld [vmem:[#allocation5 + $0x190] sm:$0xff]
    %v150 = vld [vmem:[#allocation5 + $0x198] sm:$0xff]
    %v151 = vld [vmem:[#allocation5 + $0x1a0] sm:$0xff]
    %v152 = vld [vmem:[#allocation5 + $0x1a8] sm:$0xff]
    %v153 = vld [vmem:[#allocation5 + $0x1b0] sm:$0xff]
    %v154 = vld [vmem:[#allocation5 + $0x1b8] sm:$0xff]
    %v155 = vld [vmem:[#allocation5 + $0x1c0] sm:$0xff]
    %v156 = vld [vmem:[#allocation5 + $0x1c8] sm:$0xff]
    %v157 = vld [vmem:[#allocation5 + $0x1d0] sm:$0xff]
    %v158 = vld [vmem:[#allocation5 + $0x1d8] sm:$0xff]
    %v159 = vld [vmem:[#allocation5 + $0x1e0] sm:$0xff]
    %v160 = vld [vmem:[#allocation5 + $0x1e8] sm:$0xff]
    %v161 = vld [vmem:[#allocation5 + $0x1f0] sm:$0xff]
    %v162 = vld [vmem:[#allocation5 + $0x1f8] sm:$0xff]
    %v163 = vld [vmem:[#allocation7] sm:$0x3]
    %v165 = vperm.slane %v163, 0
    %v166 = vperm.slane %v163, 1
    %v233 = vunpack.c.l.b16 %v99
    %v234 = vunpack.c.h.b16 %v99
    %v235 = vunpack.c.l.b16 %v100
    %v236 = vunpack.c.h.b16 %v100
    %v237 = vunpack.c.l.b16 %v101
    %v238 = vunpack.c.h.b16 %v101
    %v239 = vunpack.c.l.b16 %v102
    %v240 = vunpack.c.h.b16 %v102
    %v241 = vunpack.c.l.b16 %v103
    %v242 = vunpack.c.h.b16 %v103
    %v243 = vunpack.c.l.b16 %v104
    %v244 = vunpack.c.h.b16 %v104
    %v245 = vunpack.c.l.b16 %v105
    %v246 = vunpack.c.h.b16 %v105
    %v247 = vunpack.c.l.b16 %v106
    %v248 = vunpack.c.h.b16 %v106
    %v249 = vunpack.c.l.b16 %v107
    %v250 = vunpack.c.h.b16 %v107
    %v251 = vunpack.c.l.b16 %v108
    %v252 = vunpack.c.h.b16 %v108
    %v253 = vunpack.c.l.b16 %v109
    %v254 = vunpack.c.h.b16 %v109
    %v255 = vunpack.c.l.b16 %v110
    %v256 = vunpack.c.h.b16 %v110
    %v257 = vunpack.c.l.b16 %v111
    %v258 = vunpack.c.h.b16 %v111
    %v259 = vunpack.c.l.b16 %v112
    %v260 = vunpack.c.h.b16 %v112
    %v261 = vunpack.c.l.b16 %v113
    %v262 = vunpack.c.h.b16 %v113
    %v263 = vunpack.c.l.b16 %v114
    %v264 = vunpack.c.h.b16 %v114
    %v265 = vunpack.c.l.b16 %v115
    %v266 = vunpack.c.h.b16 %v115
    %v267 = vunpack.c.l.b16 %v116
    %v268 = vunpack.c.h.b16 %v116
    %v269 = vunpack.c.l.b16 %v117
    %v270 = vunpack.c.h.b16 %v117
    %v271 = vunpack.c.l.b16 %v118
    %v272 = vunpack.c.h.b16 %v118
    %v273 = vunpack.c.l.b16 %v119
    %v274 = vunpack.c.h.b16 %v119
    %v275 = vunpack.c.l.b16 %v120
    %v276 = vunpack.c.h.b16 %v120
    %v277 = vunpack.c.l.b16 %v121
    %v278 = vunpack.c.h.b16 %v121
    %v279 = vunpack.c.l.b16 %v122
    %v280 = vunpack.c.h.b16 %v122
    %v281 = vunpack.c.l.b16 %v123
    %v282 = vunpack.c.h.b16 %v123
    %v283 = vunpack.c.l.b16 %v124
    %v284 = vunpack.c.h.b16 %v124
    %v285 = vunpack.c.l.b16 %v125
    %v286 = vunpack.c.h.b16 %v125
    %v287 = vunpack.c.l.b16 %v126
    %v288 = vunpack.c.h.b16 %v126
    %v289 = vunpack.c.l.b16 %v127
    %v290 = vunpack.c.h.b16 %v127
    %v291 = vunpack.c.l.b16 %v128
    %v292 = vunpack.c.h.b16 %v128
    %v293 = vunpack.c.l.b16 %v129
    %v294 = vunpack.c.h.b16 %v129
    %v295 = vunpack.c.l.b16 %v130
    %v296 = vunpack.c.h.b16 %v130
    %v297 = vunpack.c.l.b16 %v131
    %v298 = vunpack.c.h.b16 %v131
    %v299 = vunpack.c.l.b16 %v132
    %v300 = vunpack.c.h.b16 %v132
    %v301 = vunpack.c.l.b16 %v133
    %v302 = vunpack.c.h.b16 %v133
    %v303 = vunpack.c.l.b16 %v134
    %v304 = vunpack.c.h.b16 %v134
    %v305 = vunpack.c.l.b16 %v135
    %v306 = vunpack.c.h.b16 %v135
    %v307 = vunpack.c.l.b16 %v136
    %v308 = vunpack.c.h.b16 %v136
    %v309 = vunpack.c.l.b16 %v137
    %v310 = vunpack.c.h.b16 %v137
    %v311 = vunpack.c.l.b16 %v138
    %v312 = vunpack.c.h.b16 %v138
    %v313 = vunpack.c.l.b16 %v139
    %v314 = vunpack.c.h.b16 %v139
    %v315 = vunpack.c.l.b16 %v140
    %v316 = vunpack.c.h.b16 %v140
    %v317 = vunpack.c.l.b16 %v141
    %v318 = vunpack.c.h.b16 %v141
    %v319 = vunpack.c.l.b16 %v142
    %v320 = vunpack.c.h.b16 %v142
    %v321 = vunpack.c.l.b16 %v143
    %v322 = vunpack.c.h.b16 %v143
    %v323 = vunpack.c.l.b16 %v144
    %v324 = vunpack.c.h.b16 %v144
    %v325 = vunpack.c.l.b16 %v145
    %v326 = vunpack.c.h.b16 %v145
    %v327 = vunpack.c.l.b16 %v146
    %v328 = vunpack.c.h.b16 %v146
    %v329 = vunpack.c.l.b16 %v147
    %v330 = vunpack.c.h.b16 %v147
    %v331 = vunpack.c.l.b16 %v148
    %v332 = vunpack.c.h.b16 %v148
    %v333 = vunpack.c.l.b16 %v149
    %v334 = vunpack.c.h.b16 %v149
    %v335 = vunpack.c.l.b16 %v150
    %v336 = vunpack.c.h.b16 %v150
    %v337 = vunpack.c.l.b16 %v151
    %v338 = vunpack.c.h.b16 %v151
    %v339 = vunpack.c.l.b16 %v152
    %v340 = vunpack.c.h.b16 %v152
    %v341 = vunpack.c.l.b16 %v153
    %v342 = vunpack.c.h.b16 %v153
    %v343 = vunpack.c.l.b16 %v154
    %v344 = vunpack.c.h.b16 %v154
    %v345 = vunpack.c.l.b16 %v155
    %v346 = vunpack.c.h.b16 %v155
    %v347 = vunpack.c.l.b16 %v156
    %v348 = vunpack.c.h.b16 %v156
    %v349 = vunpack.c.l.b16 %v157
    %v350 = vunpack.c.h.b16 %v157
    %v351 = vunpack.c.l.b16 %v158
    %v352 = vunpack.c.h.b16 %v158
    %v353 = vunpack.c.l.b16 %v159
    %v354 = vunpack.c.h.b16 %v159
    %v355 = vunpack.c.l.b16 %v160
    %v356 = vunpack.c.h.b16 %v160
    %v357 = vunpack.c.l.b16 %v161
    %v358 = vunpack.c.h.b16 %v161
    %v359 = vunpack.c.l.b16 %v162
    %v360 = vunpack.c.h.b16 %v162
    %v361 = vpack.c.b16 %v235, %v233
    %v362 = vpack.c.b16 %v236, %v234
    %v363 = vpack.c.b16 %v239, %v237
    %v364 = vpack.c.b16 %v240, %v238
    %v365 = vpack.c.b16 %v243, %v241
    %v366 = vpack.c.b16 %v244, %v242
    %v367 = vpack.c.b16 %v247, %v245
    %v368 = vpack.c.b16 %v248, %v246
    %v369 = vpack.c.b16 %v251, %v249
    %v370 = vpack.c.b16 %v252, %v250
    %v371 = vpack.c.b16 %v255, %v253
    %v372 = vpack.c.b16 %v256, %v254
    %v373 = vpack.c.b16 %v259, %v257
    %v374 = vpack.c.b16 %v260, %v258
    %v375 = vpack.c.b16 %v263, %v261
    %v376 = vpack.c.b16 %v264, %v262
    %v377 = vpack.c.b16 %v267, %v265
    %v378 = vpack.c.b16 %v268, %v266
    %v379 = vpack.c.b16 %v271, %v269
    %v380 = vpack.c.b16 %v272, %v270
    %v381 = vpack.c.b16 %v275, %v273
    %v382 = vpack.c.b16 %v276, %v274
    %v383 = vpack.c.b16 %v279, %v277
    %v384 = vpack.c.b16 %v280, %v278
    %v385 = vpack.c.b16 %v283, %v281
    %v386 = vpack.c.b16 %v284, %v282
    %v387 = vpack.c.b16 %v287, %v285
    %v388 = vpack.c.b16 %v288, %v286
    %v389 = vpack.c.b16 %v291, %v289
    %v390 = vpack.c.b16 %v292, %v290
    %v391 = vpack.c.b16 %v295, %v293
    %v392 = vpack.c.b16 %v296, %v294
    %v393 = vpack.c.b16 %v299, %v297
    %v394 = vpack.c.b16 %v300, %v298
    %v395 = vpack.c.b16 %v303, %v301
    %v396 = vpack.c.b16 %v304, %v302
    %v397 = vpack.c.b16 %v307, %v305
    %v398 = vpack.c.b16 %v308, %v306
    %v399 = vpack.c.b16 %v311, %v309
    %v400 = vpack.c.b16 %v312, %v310
    %v401 = vpack.c.b16 %v315, %v313
    %v402 = vpack.c.b16 %v316, %v314
    %v403 = vpack.c.b16 %v319, %v317
    %v404 = vpack.c.b16 %v320, %v318
    %v405 = vpack.c.b16 %v323, %v321
    %v406 = vpack.c.b16 %v324, %v322
    %v407 = vpack.c.b16 %v327, %v325
    %v408 = vpack.c.b16 %v328, %v326
    %v409 = vpack.c.b16 %v331, %v329
    %v410 = vpack.c.b16 %v332, %v330
    %v411 = vpack.c.b16 %v335, %v333
    %v412 = vpack.c.b16 %v336, %v334
    %v413 = vpack.c.b16 %v339, %v337
    %v414 = vpack.c.b16 %v340, %v338
    %v415 = vpack.c.b16 %v343, %v341
    %v416 = vpack.c.b16 %v344, %v342
    %v417 = vpack.c.b16 %v347, %v345
    %v418 = vpack.c.b16 %v348, %v346
    %v419 = vpack.c.b16 %v351, %v349
    %v420 = vpack.c.b16 %v352, %v350
    %v421 = vpack.c.b16 %v355, %v353
    %v422 = vpack.c.b16 %v356, %v354
    %v423 = vpack.c.b16 %v359, %v357
    %v424 = vpack.c.b16 %v360, %v358
    %489 = vmatpush.bf16.msra.mxu0 %v375
    %490 = vmatpush.bf16.msra.mxu0 %v373
    %491 = vmatpush.bf16.msra.mxu0 %v371
    %492 = vmatpush.bf16.msra.mxu0 %v369
    %493 = vmatpush.bf16.msra.mxu0 %v367
    %494 = vmatpush.bf16.msra.mxu0 %v365
    %495 = vmatpush.bf16.msra.mxu0 %v363
    %496 = vmatpush.bf16.msra.mxu0 %v361
    %497 = vmatmul.bf16.gmra.mxu0 %v95
    %v498 = vpop.f32.mrf.mxu0
    %v499 = vadd.f32 %v165, %v498
    %v500 = vpop.f32.mrf.mxu0
    %501 = vdwg.mxu0
    %502 = vmatpush.bf16.msra.mxu0 %v391
    %503 = vmatpush.bf16.msra.mxu0 %v389
    %504 = vmatpush.bf16.msra.mxu0 %v387
    %505 = vmatpush.bf16.msra.mxu0 %v385
    %506 = vmatpush.bf16.msra.mxu0 %v383
    %507 = vmatpush.bf16.msra.mxu0 %v381
    %508 = vmatpush.bf16.msra.mxu0 %v379
    %509 = vmatpush.bf16.msra.mxu0 %v377
    %510 = vmatmul.bf16.gmra.mxu0 %v96
    %v511 = vpop.f32.mrf.mxu0
    %v512 = vadd.f32 %v499, %v511
    %v513 = vpop.f32.mrf.mxu0
    %514 = vdwg.mxu0
    %515 = vmatpush.bf16.msra.mxu0 %v407
    %516 = vmatpush.bf16.msra.mxu0 %v405
    %517 = vmatpush.bf16.msra.mxu0 %v403
    %518 = vmatpush.bf16.msra.mxu0 %v401
    %519 = vmatpush.bf16.msra.mxu0 %v399
    %520 = vmatpush.bf16.msra.mxu0 %v397
    %521 = vmatpush.bf16.msra.mxu0 %v395
    %522 = vmatpush.bf16.msra.mxu0 %v393
    %523 = vmatmul.bf16.gmra.mxu0 %v97
    %v524 = vpop.f32.mrf.mxu0
    %v525 = vadd.f32 %v512, %v524
    %v526 = vpop.f32.mrf.mxu0
    %527 = vdwg.mxu0
    %528 = vmatpush.bf16.msra.mxu0 %v423
    %529 = vmatpush.bf16.msra.mxu0 %v421
    %530 = vmatpush.bf16.msra.mxu0 %v419
    %531 = vmatpush.bf16.msra.mxu0 %v417
    %532 = vmatpush.bf16.msra.mxu0 %v415
    %533 = vmatpush.bf16.msra.mxu0 %v413
    %534 = vmatpush.bf16.msra.mxu0 %v411
    %535 = vmatpush.bf16.msra.mxu0 %v409
    %536 = vmatmul.bf16.gmra.mxu0 %v98
    %v537 = vpop.f32.mrf.mxu0
    %v538 = vadd.f32 %v525, %v537
    %v539 = vpop.f32.mrf.mxu0
    %540 = vdwg.mxu0
    %541 = vmatpush.bf16.msra.mxu0 %v376
    %542 = vmatpush.bf16.msra.mxu0 %v374
    %543 = vmatpush.bf16.msra.mxu0 %v372
    %544 = vmatpush.bf16.msra.mxu0 %v370
    %545 = vmatpush.bf16.msra.mxu0 %v368
    %546 = vmatpush.bf16.msra.mxu0 %v366
    %547 = vmatpush.bf16.msra.mxu0 %v364
    %548 = vmatpush.bf16.msra.mxu0 %v362
    %549 = vmatmul.bf16.gmra.mxu0 %v95
    %v550 = vpop.f32.mrf.mxu0
    %v551 = vadd.f32 %v166, %v550
    %v552 = vpop.f32.mrf.mxu0
    %553 = vdwg.mxu0
    %554 = vmatpush.bf16.msra.mxu0 %v392
    %555 = vmatpush.bf16.msra.mxu0 %v390
    %556 = vmatpush.bf16.msra.mxu0 %v388
    %557 = vmatpush.bf16.msra.mxu0 %v386
    %558 = vmatpush.bf16.msra.mxu0 %v384
    %559 = vmatpush.bf16.msra.mxu0 %v382
    %560 = vmatpush.bf16.msra.mxu0 %v380
    %561 = vmatpush.bf16.msra.mxu0 %v378
    %562 = vmatmul.bf16.gmra.mxu0 %v96
    %v563 = vpop.f32.mrf.mxu0
    %v564 = vadd.f32 %v551, %v563
    %v565 = vpop.f32.mrf.mxu0
    %566 = vdwg.mxu0
    %567 = vmatpush.bf16.msra.mxu0 %v408
    %568 = vmatpush.bf16.msra.mxu0 %v406
    %569 = vmatpush.bf16.msra.mxu0 %v404
    %570 = vmatpush.bf16.msra.mxu0 %v402
    %571 = vmatpush.bf16.msra.mxu0 %v400
    %572 = vmatpush.bf16.msra.mxu0 %v398
    %573 = vmatpush.bf16.msra.mxu0 %v396
    %574 = vmatpush.bf16.msra.mxu0 %v394
    %575 = vmatmul.bf16.gmra.mxu0 %v97
    %v576 = vpop.f32.mrf.mxu0
    %v577 = vadd.f32 %v564, %v576
    %v578 = vpop.f32.mrf.mxu0
    %579 = vdwg.mxu0
    %580 = vmatpush.bf16.msra.mxu0 %v424
    %581 = vmatpush.bf16.msra.mxu0 %v422
    %582 = vmatpush.bf16.msra.mxu0 %v420
    %583 = vmatpush.bf16.msra.mxu0 %v418
    %584 = vmatpush.bf16.msra.mxu0 %v416
    %585 = vmatpush.bf16.msra.mxu0 %v414
    %586 = vmatpush.bf16.msra.mxu0 %v412
    %587 = vmatpush.bf16.msra.mxu0 %v410
    %588 = vmatmul.bf16.gmra.mxu0 %v98
    %v589 = vpop.f32.mrf.mxu0
    %v590 = vadd.f32 %v577, %v589
    %v591 = vpop.f32.mrf.mxu0
    %592 = vdwg.mxu0
    %v593 = vmax.f32 %v538, 0.0
    %v594 = vmax.f32 %v590, 0.0
    %v595 = vpack.c.bf16 %v593, %v593
    %v596 = vpack.c.bf16 %v594, %v594
    %v597 = vld [vmem:[#allocation8] sm:$0xf]
    %v598 = vld [vmem:[#allocation8 + $0x4] sm:$0xf]
    %v599 = vld [vmem:[#allocation8 + $0x8] sm:$0xf]
    %v600 = vld [vmem:[#allocation8 + $0xc] sm:$0xf]
    %v601 = vld [vmem:[#allocation8 + $0x10] sm:$0xf]
    %v602 = vld [vmem:[#allocation8 + $0x14] sm:$0xf]
    %v603 = vld [vmem:[#allocation8 + $0x18] sm:$0xf]
    %v604 = vld [vmem:[#allocation8 + $0x1c] sm:$0xf]
    %v605 = vld [vmem:[#allocation8 + $0x20] sm:$0xf]
    %v606 = vld [vmem:[#allocation8 + $0x24] sm:$0xf]
    %v607 = vld [vmem:[#allocation8 + $0x28] sm:$0xf]
    %v608 = vld [vmem:[#allocation8 + $0x2c] sm:$0xf]
    %v609 = vld [vmem:[#allocation8 + $0x30] sm:$0xf]
    %v610 = vld [vmem:[#allocation8 + $0x34] sm:$0xf]
    %v611 = vld [vmem:[#allocation8 + $0x38] sm:$0xf]
    %v612 = vld [vmem:[#allocation8 + $0x3c] sm:$0xf]
    %v613 = vld [vmem:[#allocation8 + $0x40] sm:$0xf]
    %v614 = vld [vmem:[#allocation8 + $0x44] sm:$0xf]
    %v615 = vld [vmem:[#allocation8 + $0x48] sm:$0xf]
    %v616 = vld [vmem:[#allocation8 + $0x4c] sm:$0xf]
    %v617 = vld [vmem:[#allocation8 + $0x50] sm:$0xf]
    %v618 = vld [vmem:[#allocation8 + $0x54] sm:$0xf]
    %v619 = vld [vmem:[#allocation8 + $0x58] sm:$0xf]
    %v620 = vld [vmem:[#allocation8 + $0x5c] sm:$0xf]
    %v621 = vld [vmem:[#allocation8 + $0x60] sm:$0xf]
    %v622 = vld [vmem:[#allocation8 + $0x64] sm:$0xf]
    %v623 = vld [vmem:[#allocation8 + $0x68] sm:$0xf]
    %v624 = vld [vmem:[#allocation8 + $0x6c] sm:$0xf]
    %v625 = vld [vmem:[#allocation8 + $0x70] sm:$0xf]
    %v626 = vld [vmem:[#allocation8 + $0x74] sm:$0xf]
    %v627 = vld [vmem:[#allocation8 + $0x78] sm:$0xf]
    %v628 = vld [vmem:[#allocation8 + $0x7c] sm:$0xf]
    %v629 = vld [vmem:[%s4] sm:$0x1]
    %v631 = vperm.slane %v629, 0
    %v665 = vunpack.c.l.b16 %v597
    %v666 = vunpack.c.l.b16 %v598
    %v667 = vunpack.c.l.b16 %v599
    %v668 = vunpack.c.l.b16 %v600
    %v669 = vunpack.c.l.b16 %v601
    %v670 = vunpack.c.l.b16 %v602
    %v671 = vunpack.c.l.b16 %v603
    %v672 = vunpack.c.l.b16 %v604
    %v673 = vunpack.c.l.b16 %v605
    %v674 = vunpack.c.l.b16 %v606
    %v675 = vunpack.c.l.b16 %v607
    %v676 = vunpack.c.l.b16 %v608
    %v677 = vunpack.c.l.b16 %v609
    %v678 = vunpack.c.l.b16 %v610
    %v679 = vunpack.c.l.b16 %v611
    %v680 = vunpack.c.l.b16 %v612
    %v681 = vunpack.c.l.b16 %v613
    %v682 = vunpack.c.l.b16 %v614
    %v683 = vunpack.c.l.b16 %v615
    %v684 = vunpack.c.l.b16 %v616
    %v685 = vunpack.c.l.b16 %v617
    %v686 = vunpack.c.l.b16 %v618
    %v687 = vunpack.c.l.b16 %v619
    %v688 = vunpack.c.l.b16 %v620
    %v689 = vunpack.c.l.b16 %v621
    %v690 = vunpack.c.l.b16 %v622
    %v691 = vunpack.c.l.b16 %v623
    %v692 = vunpack.c.l.b16 %v624
    %v693 = vunpack.c.l.b16 %v625
    %v694 = vunpack.c.l.b16 %v626
    %v695 = vunpack.c.l.b16 %v627
    %v696 = vunpack.c.l.b16 %v628
    %v697 = vpack.c.b16 %v666, %v665
    %v698 = vpack.c.b16 %v668, %v667
    %v699 = vpack.c.b16 %v670, %v669
    %v700 = vpack.c.b16 %v672, %v671
    %v701 = vpack.c.b16 %v674, %v673
    %v702 = vpack.c.b16 %v676, %v675
    %v703 = vpack.c.b16 %v678, %v677
    %v704 = vpack.c.b16 %v680, %v679
    %v705 = vpack.c.b16 %v682, %v681
    %v706 = vpack.c.b16 %v684, %v683
    %v707 = vpack.c.b16 %v686, %v685
    %v708 = vpack.c.b16 %v688, %v687
    %v709 = vpack.c.b16 %v690, %v689
    %v710 = vpack.c.b16 %v692, %v691
    %v711 = vpack.c.b16 %v694, %v693
    %v712 = vpack.c.b16 %v696, %v695
    %729 = vmatpush.bf16.msra.mxu0 %v704
    %730 = vmatpush.bf16.msra.mxu0 %v703
    %731 = vmatpush.bf16.msra.mxu0 %v702
    %732 = vmatpush.bf16.msra.mxu0 %v701
    %733 = vmatpush.bf16.msra.mxu0 %v700
    %734 = vmatpush.bf16.msra.mxu0 %v699
    %735 = vmatpush.bf16.msra.mxu0 %v698
    %736 = vmatpush.bf16.msra.mxu0 %v697
    %737 = vmatmul.bf16.gmra.mxu0 %v595
    %v738 = vpop.f32.mrf.mxu0
    %v739 = vadd.f32 %v631, %v738
    %v740 = vpop.f32.mrf.mxu0
    %741 = vdwg.mxu0
    %742 = vmatpush.bf16.msra.mxu0 %v712
    %743 = vmatpush.bf16.msra.mxu0 %v711
    %744 = vmatpush.bf16.msra.mxu0 %v710
    %745 = vmatpush.bf16.msra.mxu0 %v709
    %746 = vmatpush.bf16.msra.mxu0 %v708
    %747 = vmatpush.bf16.msra.mxu0 %v707
    %748 = vmatpush.bf16.msra.mxu0 %v706
    %749 = vmatpush.bf16.msra.mxu0 %v705
    %750 = vmatmul.bf16.gmra.mxu0 %v596
    %v751 = vpop.f32.mrf.mxu0
    %v752 = vadd.f32 %v739, %v751
    %v753 = vpop.f32.mrf.mxu0
    %754 = vdwg.mxu0
    %vm755 = vcmask 1043456
    %v756 = vsel %vm755, %v752, -inf
    %757 = vmax.xlane.f32.xlu0 %v756
    %v758 = vpop.xlane.xlu0 %757
    %v759 = vsub.f32 %v752, %v758
    %v760 = vmul.f32 %v759, 1.442695
    %v761 = vpow.pop %v760
    %v762 = vsel %vm755, %v761, 0.0
    %763 = vadd.xlane.f32.xlu0 %v762
    %v764 = vpop.xlane.xlu0 %763
    %v765 = vrcp.pop %v764
    %v766 = vmul.f32 %v761, %v765
    %vm767 = vcmask 60416
    %768 = vst.msk [vmem:[#allocation10] sm:$0xf] %vm767, %v766
    // Predicated region
    $region38: #{tpu_custom_call.1} parent=1 // pred_check
      _
    $region39: #{tpu_custom_call.1} parent=1 // pred_check_branch
      %770 = sbr.rel (0) target = $region41
    $region40: #{tpu_custom_call.1} parent=1 // pred_region
      %772 = vsyncadd [#allocation4], 0
      %s774 = sshll.u32 [#allocation10], 4
      %s775 = int_to_ptr.vmem [resolvable:$true] %s774
      %s776 = sshll.u32 %s5, 4
      %s777 = int_to_ptr.hbm [resolvable:$true] %s776
      %779 = dma.vmem_to_hbm [thread:$0]  %s775, 64, %s777, [#allocation4]
    $region41: #{tpu_custom_call.1} parent=1 // pred_fallthru
      _
    // Predicated region
    $region42: #{tpu_custom_call.1} parent=1 // pred_check
      _
    $region43: #{tpu_custom_call.1} parent=1 // pred_check_branch
      %781 = sbr.rel (0) target = $region45
    $region44: #{tpu_custom_call.1} parent=1 // pred_region
      %783 = dma.done [#allocation4], 64
    $region45: #{tpu_custom_call.1} parent=1 // pred_fallthru
      _
    %784 = vsyncpa [#allocation3], 1
    %785 = vsyncpa [#allocation6], 1
    %786 = vsyncpa [#allocation9], 1
    %787 = vsyncpa [#allocation4], 1

// kernel: tpu_custom_call.1
$region0: #{tpu_custom_call.1}
  #allocation0 [shape = 'u32[]', space=smem, size = 0x4, offset = 0x4, fixed_abs, tag = 'smem constant byte address 0x4 - core index']
  #allocation1 [shape = 'u32[72,128]{1,0:T(1,128)}', space=vmem, size = 0x9000, scoped, tag = 'internal scratch']
  %s0 = inlined_call_operand.hbm [shape: f32[4,512], index: 0, kind: input, shape index: {}]
  %s1 = inlined_call_operand.hbm [shape: bf16[512,256], index: 1, kind: input, shape index: {}]
  %s2 = inlined_call_operand.hbm [shape: f32[1,256], index: 2, kind: input, shape index: {}]
  %s3 = inlined_call_operand.hbm [shape: bf16[256,128], index: 3, kind: input, shape index: {}]
  %s4 = inlined_call_operand.vmem [shape: f32[1,128], index: 4, kind: input, shape index: {}]
  %s5 = inlined_call_operand.hbm [shape: f32[4,8], index: 5, kind: output, shape index: {}]
  %s6 = sld [smem:[#allocation0]]
  $region46: #{tpu_custom_call.1} parent=0
    _
  %s8 = ssub.s32 1, %s6
  %s9 = scalar_select 0, %s8, %s6
  $region1: #{tpu_custom_call.1} parent=0
    #allocation2 [shape = 'u8[8192]{0}', space=vmem, size = 0x2000, scoped, tag = 'input window, operand 0, single buffered']
    #allocation3 [shape = 's32[1]{0}', space=sflag, size = 0x4, scoped, tag = 'scoped memory for tpu_custom_call.1']
    #allocation4 [shape = 's32[1]{0}', space=sflag, size = 0x4, scoped, tag = 'scoped memory for tpu_custom_call.1']
    #allocation5 [shape = 'u8[262144]{0}', space=vmem, size = 0x40000, scoped, tag = 'input window, operand 1, single buffered']
    #allocation6 [shape = 's32[1]{0}', space=sflag, size = 0x4, scoped, tag = 'scoped memory for tpu_custom_call.1']
    #allocation7 [shape = 'u8[1024]{0}', space=vmem, size = 0x400, scoped, tag = 'input window, operand 2, single buffered']
    #allocation8 [shape = 'u8[65536]{0}', space=vmem, size = 0x10000, scoped, tag = 'input window, operand 3, single buffered']
    #allocation9 [shape = 's32[1]{0}', space=sflag, size = 0x4, scoped, tag = 'scoped memory for tpu_custom_call.1']
    #allocation10 [shape = 'u8[2048]{0}', space=vmem, size = 0x800, scoped, tag = 'output window, operand 0, single buffered']
    %10 = vsyncpa [#allocation3], 0
    %11 = vsyncpa [#allocation6], 0
    %12 = vsyncpa [#allocation9], 0
    %13 = vsyncpa [#allocation4], 0
    // Predicated region
    $region2: #{tpu_custom_call.1} parent=1 // pred_check
      _
    $region3: #{tpu_custom_call.1} parent=1 // pred_check_branch
      %15 = sbr.rel (0) target = $region5
    $region4: #{tpu_custom_call.1} parent=1 // pred_region
      %17 = vsyncadd [#allocation3], 0
      %s19 = sshll.u32 %s0, 4
      %s20 = int_to_ptr.hbm [resolvable:$true] %s19
      %s21 = sshll.u32 [#allocation2], 4
      %s22 = int_to_ptr.vmem [resolvable:$true] %s21
      %24 = dma.hbm_to_vmem [thread:$0]  %s20, 256, %s22, [#allocation3]
    $region5: #{tpu_custom_call.1} parent=1 // pred_fallthru
      _
    // Predicated region
    $region6: #{tpu_custom_call.1} parent=1 // pred_check
      _
    $region7: #{tpu_custom_call.1} parent=1 // pred_check_branch
      %26 = sbr.rel (0) target = $region9
    $region8: #{tpu_custom_call.1} parent=1 // pred_region
      %28 = vsyncadd [#allocation6], 0
      %s29 = sshll.u32 %s1, 4
      %s30 = int_to_ptr.hbm [resolvable:$true] %s29
      %s31 = sshll.u32 [#allocation5], 4
      %s32 = int_to_ptr.vmem [resolvable:$true] %s31
      %37 = dma.hbm_to_vmem [thread:$0]  %s30, 8192, %s32, [#allocation6], 128, 128, 8
    $region9: #{tpu_custom_call.1} parent=1 // pred_fallthru
      _
    // Predicated region
    $region10: #{tpu_custom_call.1} parent=1 // pred_check
      _
    $region11: #{tpu_custom_call.1} parent=1 // pred_check_branch
      %39 = sbr.rel (0) target = $region13
    $region12: #{tpu_custom_call.1} parent=1 // pred_region
      %41 = vsyncadd [#allocation6], 0
      %s43 = sshll.u32 %s2, 4
      %s44 = int_to_ptr.hbm [resolvable:$true] %s43
      %s45 = sshll.u32 [#allocation7], 4
      %s46 = int_to_ptr.vmem [resolvable:$true] %s45
      %48 = dma.hbm_to_vmem [thread:$0]  %s44, 32, %s46, [#allocation6]
    $region13: #{tpu_custom_call.1} parent=1 // pred_fallthru
      _
    // Predicated region
    $region14: #{tpu_custom_call.1} parent=1 // pred_check
      _
    $region15: #{tpu_custom_call.1} parent=1 // pred_check_branch
      %50 = sbr.rel (0) target = $region17
    $region16: #{tpu_custom_call.1} parent=1 // pred_region
      %52 = vsyncadd [#allocation9], 0
      %s53 = sshll.u32 %s3, 4
      %s54 = int_to_ptr.hbm [resolvable:$true] %s53
      %s55 = sshll.u32 [#allocation8], 4
      %s56 = int_to_ptr.vmem [resolvable:$true] %s55
      %61 = dma.hbm_to_vmem [thread:$0]  %s54, 2048, %s56, [#allocation9], 64, 64, 4
    $region17: #{tpu_custom_call.1} parent=1 // pred_fallthru
      _
    // Predicated region
    $region18: #{tpu_custom_call.1} parent=1 // pred_check
      _
    $region19: #{tpu_custom_call.1} parent=1 // pred_check_branch
      %63 = sbr.rel (0) target = $region21
    $region20: #{tpu_custom_call.1} parent=1 // pred_region
      _
    $region21: #{tpu_custom_call.1} parent=1 // pred_fallthru
      _
    // Predicated region
    $region22: #{tpu_custom_call.1} parent=1 // pred_check
      _
    $region23: #{tpu_custom_call.1} parent=1 // pred_check_branch
      %65 = sbr.rel (0) target = $region25
    $region24: #{tpu_custom_call.1} parent=1 // pred_region
      %67 = dma.done [#allocation3], 256
    $region25: #{tpu_custom_call.1} parent=1 // pred_fallthru
      _
    // Predicated region
    $region26: #{tpu_custom_call.1} parent=1 // pred_check
      _
    $region27: #{tpu_custom_call.1} parent=1 // pred_check_branch
      %69 = sbr.rel (0) target = $region29
    $region28: #{tpu_custom_call.1} parent=1 // pred_region
      %71 = dma.done [#allocation6], 8192
    $region29: #{tpu_custom_call.1} parent=1 // pred_fallthru
      _
    // Predicated region
    $region30: #{tpu_custom_call.1} parent=1 // pred_check
      _
    $region31: #{tpu_custom_call.1} parent=1 // pred_check_branch
      %73 = sbr.rel (0) target = $region33
    $region32: #{tpu_custom_call.1} parent=1 // pred_region
      %75 = dma.done [#allocation6], 32
    $region33: #{tpu_custom_call.1} parent=1 // pred_fallthru
      _
    // Predicated region
    $region34: #{tpu_custom_call.1} parent=1 // pred_check
      _
    $region35: #{tpu_custom_call.1} parent=1 // pred_check_branch
      %77 = sbr.rel (0) target = $region37
    $region36: #{tpu_custom_call.1} parent=1 // pred_region
      %79 = dma.done [#allocation9], 2048
    $region37: #{tpu_custom_call.1} parent=1 // pred_fallthru
      _
    %v80 = vld [vmem:[#allocation2] sm:$0xff]
    %v81 = vld [vmem:[#allocation2 + $0x8] sm:$0xff]
    %84 = vst [vmem:[#allocation1] ss:$2 sm:$0xff] %v80
    %s85 = scalar_lea.vmem [#allocation1], 16
    %86 = vst [vmem:[%s85] ss:$2 sm:$0xff] %v81
    %v87 = vld.sshfl [vmem:[#allocation1] sm:$0xff pattern:$0x75316420]
    %v88 = vld.sshfl [vmem:[#allocation1 + $0x8] sm:$0xff pattern:$0x75316420]
    %v89 = vld.sshfl [vmem:[#allocation1 + $0x10] sm:$0xff pattern:$0x75316420]
    %v90 = vld.sshfl [vmem:[#allocation1 + $0x18] sm:$0xff pattern:$0x75316420]
    %v95 = vpack.c.bf16 %v87, %v87
    %v96 = vpack.c.bf16 %v88, %v88
    %v97 = vpack.c.bf16 %v89, %v89
    %v98 = vpack.c.bf16 %v90, %v90
    %v99 = vld [vmem:[#allocation5] sm:$0xff]
    %v100 = vld [vmem:[#allocation5 + $0x8] sm:$0xff]
    %v101 = vld [vmem:[#allocation5 + $0x10] sm:$0xff]
    %v102 = vld [vmem:[#allocation5 + $0x18] sm:$0xff]
    %v103 = vld [vmem:[#allocation5 + $0x20] sm:$0xff]
    %v104 = vld [vmem:[#allocation5 + $0x28] sm:$0xff]
    %v105 = vld [vmem:[#allocation5 + $0x30] sm:$0xff]
    %v106 = vld [vmem:[#allocation5 + $0x38] sm:$0xff]
    %v107 = vld [vmem:[#allocation5 + $0x40] sm:$0xff]
    %v108 = vld [vmem:[#allocation5 + $0x48] sm:$0xff]
    %v109 = vld [vmem:[#allocation5 + $0x50] sm:$0xff]
    %v110 = vld [vmem:[#allocation5 + $0x58] sm:$0xff]
    %v111 = vld [vmem:[#allocation5 + $0x60] sm:$0xff]
    %v112 = vld [vmem:[#allocation5 + $0x68] sm:$0xff]
    %v113 = vld [vmem:[#allocation5 + $0x70] sm:$0xff]
    %v114 = vld [vmem:[#allocation5 + $0x78] sm:$0xff]
    %v115 = vld [vmem:[#allocation5 + $0x80] sm:$0xff]
    %v116 = vld [vmem:[#allocation5 + $0x88] sm:$0xff]
    %v117 = vld [vmem:[#allocation5 + $0x90] sm:$0xff]
    %v118 = vld [vmem:[#allocation5 + $0x98] sm:$0xff]
    %v119 = vld [vmem:[#allocation5 + $0xa0] sm:$0xff]
    %v120 = vld [vmem:[#allocation5 + $0xa8] sm:$0xff]
    %v121 = vld [vmem:[#allocation5 + $0xb0] sm:$0xff]
    %v122 = vld [vmem:[#allocation5 + $0xb8] sm:$0xff]
    %v123 = vld [vmem:[#allocation5 + $0xc0] sm:$0xff]
    %v124 = vld [vmem:[#allocation5 + $0xc8] sm:$0xff]
    %v125 = vld [vmem:[#allocation5 + $0xd0] sm:$0xff]
    %v126 = vld [vmem:[#allocation5 + $0xd8] sm:$0xff]
    %v127 = vld [vmem:[#allocation5 + $0xe0] sm:$0xff]
    %v128 = vld [vmem:[#allocation5 + $0xe8] sm:$0xff]
    %v129 = vld [vmem:[#allocation5 + $0xf0] sm:$0xff]
    %v130 = vld [vmem:[#allocation5 + $0xf8] sm:$0xff]
    %v131 = vld [vmem:[#allocation5 + $0x100] sm:$0xff]
    %v132 = vld [vmem:[#allocation5 + $0x108] sm:$0xff]
    %v133 = vld [vmem:[#allocation5 + $0x110] sm:$0xff]
    %v134 = vld [vmem:[#allocation5 + $0x118] sm:$0xff]
    %v135 = vld [vmem:[#allocation5 + $0x120] sm:$0xff]
    %v136 = vld [vmem:[#allocation5 + $0x128] sm:$0xff]
    %v137 = vld [vmem:[#allocation5 + $0x130] sm:$0xff]
    %v138 = vld [vmem:[#allocation5 + $0x138] sm:$0xff]
    %v139 = vld [vmem:[#allocation5 + $0x140] sm:$0xff]
    %v140 = vld [vmem:[#allocation5 + $0x148] sm:$0xff]
    %v141 = vld [vmem:[#allocation5 + $0x150] sm:$0xff]
    %v142 = vld [vmem:[#allocation5 + $0x158] sm:$0xff]
    %v143 = vld [vmem:[#allocation5 + $0x160] sm:$0xff]
    %v144 = vld [vmem:[#allocation5 + $0x168] sm:$0xff]
    %v145 = vld [vmem:[#allocation5 + $0x170] sm:$0xff]
    %v146 = vld [vmem:[#allocation5 + $0x178] sm:$0xff]
    %v147 = vld [vmem:[#allocation5 + $0x180] sm:$0xff]
    %v148 = vld [vmem:[#allocation5 + $0x188] sm:$0xff]
    %v149 = vld [vmem:[#allocation5 + $0x190] sm:$0xff]
    %v150 = vld [vmem:[#allocation5 + $0x198] sm:$0xff]
    %v151 = vld [vmem:[#allocation5 + $0x1a0] sm:$0xff]
    %v152 = vld [vmem:[#allocation5 + $0x1a8] sm:$0xff]
    %v153 = vld [vmem:[#allocation5 + $0x1b0] sm:$0xff]
    %v154 = vld [vmem:[#allocation5 + $0x1b8] sm:$0xff]
    %v155 = vld [vmem:[#allocation5 + $0x1c0] sm:$0xff]
    %v156 = vld [vmem:[#allocation5 + $0x1c8] sm:$0xff]
    %v157 = vld [vmem:[#allocation5 + $0x1d0] sm:$0xff]
    %v158 = vld [vmem:[#allocation5 + $0x1d8] sm:$0xff]
    %v159 = vld [vmem:[#allocation5 + $0x1e0] sm:$0xff]
    %v160 = vld [vmem:[#allocation5 + $0x1e8] sm:$0xff]
    %v161 = vld [vmem:[#allocation5 + $0x1f0] sm:$0xff]
    %v162 = vld [vmem:[#allocation5 + $0x1f8] sm:$0xff]
    %v163 = vld [vmem:[#allocation7] sm:$0x3]
    %v165 = vperm.slane %v163, 0
    %v166 = vperm.slane %v163, 1
    %v233 = vunpack.c.l.b16 %v99
    %v234 = vunpack.c.h.b16 %v99
    %v235 = vunpack.c.l.b16 %v100
    %v236 = vunpack.c.h.b16 %v100
    %v237 = vunpack.c.l.b16 %v101
    %v238 = vunpack.c.h.b16 %v101
    %v239 = vunpack.c.l.b16 %v102
    %v240 = vunpack.c.h.b16 %v102
    %v241 = vunpack.c.l.b16 %v103
    %v242 = vunpack.c.h.b16 %v103
    %v243 = vunpack.c.l.b16 %v104
    %v244 = vunpack.c.h.b16 %v104
    %v245 = vunpack.c.l.b16 %v105
    %v246 = vunpack.c.h.b16 %v105
    %v247 = vunpack.c.l.b16 %v106
    %v248 = vunpack.c.h.b16 %v106
    %v249 = vunpack.c.l.b16 %v107
    %v250 = vunpack.c.h.b16 %v107
    %v251 = vunpack.c.l.b16 %v108
    %v252 = vunpack.c.h.b16 %v108
    %v253 = vunpack.c.l.b16 %v109
    %v254 = vunpack.c.h.b16 %v109
    %v255 = vunpack.c.l.b16 %v110
    %v256 = vunpack.c.h.b16 %v110
    %v257 = vunpack.c.l.b16 %v111
    %v258 = vunpack.c.h.b16 %v111
    %v259 = vunpack.c.l.b16 %v112
    %v260 = vunpack.c.h.b16 %v112
    %v261 = vunpack.c.l.b16 %v113
    %v262 = vunpack.c.h.b16 %v113
    %v263 = vunpack.c.l.b16 %v114
    %v264 = vunpack.c.h.b16 %v114
    %v265 = vunpack.c.l.b16 %v115
    %v266 = vunpack.c.h.b16 %v115
    %v267 = vunpack.c.l.b16 %v116
    %v268 = vunpack.c.h.b16 %v116
    %v269 = vunpack.c.l.b16 %v117
    %v270 = vunpack.c.h.b16 %v117
    %v271 = vunpack.c.l.b16 %v118
    %v272 = vunpack.c.h.b16 %v118
    %v273 = vunpack.c.l.b16 %v119
    %v274 = vunpack.c.h.b16 %v119
    %v275 = vunpack.c.l.b16 %v120
    %v276 = vunpack.c.h.b16 %v120
    %v277 = vunpack.c.l.b16 %v121
    %v278 = vunpack.c.h.b16 %v121
    %v279 = vunpack.c.l.b16 %v122
    %v280 = vunpack.c.h.b16 %v122
    %v281 = vunpack.c.l.b16 %v123
    %v282 = vunpack.c.h.b16 %v123
    %v283 = vunpack.c.l.b16 %v124
    %v284 = vunpack.c.h.b16 %v124
    %v285 = vunpack.c.l.b16 %v125
    %v286 = vunpack.c.h.b16 %v125
    %v287 = vunpack.c.l.b16 %v126
    %v288 = vunpack.c.h.b16 %v126
    %v289 = vunpack.c.l.b16 %v127
    %v290 = vunpack.c.h.b16 %v127
    %v291 = vunpack.c.l.b16 %v128
    %v292 = vunpack.c.h.b16 %v128
    %v293 = vunpack.c.l.b16 %v129
    %v294 = vunpack.c.h.b16 %v129
    %v295 = vunpack.c.l.b16 %v130
    %v296 = vunpack.c.h.b16 %v130
    %v297 = vunpack.c.l.b16 %v131
    %v298 = vunpack.c.h.b16 %v131
    %v299 = vunpack.c.l.b16 %v132
    %v300 = vunpack.c.h.b16 %v132
    %v301 = vunpack.c.l.b16 %v133
    %v302 = vunpack.c.h.b16 %v133
    %v303 = vunpack.c.l.b16 %v134
    %v304 = vunpack.c.h.b16 %v134
    %v305 = vunpack.c.l.b16 %v135
    %v306 = vunpack.c.h.b16 %v135
    %v307 = vunpack.c.l.b16 %v136
    %v308 = vunpack.c.h.b16 %v136
    %v309 = vunpack.c.l.b16 %v137
    %v310 = vunpack.c.h.b16 %v137
    %v311 = vunpack.c.l.b16 %v138
    %v312 = vunpack.c.h.b16 %v138
    %v313 = vunpack.c.l.b16 %v139
    %v314 = vunpack.c.h.b16 %v139
    %v315 = vunpack.c.l.b16 %v140
    %v316 = vunpack.c.h.b16 %v140
    %v317 = vunpack.c.l.b16 %v141
    %v318 = vunpack.c.h.b16 %v141
    %v319 = vunpack.c.l.b16 %v142
    %v320 = vunpack.c.h.b16 %v142
    %v321 = vunpack.c.l.b16 %v143
    %v322 = vunpack.c.h.b16 %v143
    %v323 = vunpack.c.l.b16 %v144
    %v324 = vunpack.c.h.b16 %v144
    %v325 = vunpack.c.l.b16 %v145
    %v326 = vunpack.c.h.b16 %v145
    %v327 = vunpack.c.l.b16 %v146
    %v328 = vunpack.c.h.b16 %v146
    %v329 = vunpack.c.l.b16 %v147
    %v330 = vunpack.c.h.b16 %v147
    %v331 = vunpack.c.l.b16 %v148
    %v332 = vunpack.c.h.b16 %v148
    %v333 = vunpack.c.l.b16 %v149
    %v334 = vunpack.c.h.b16 %v149
    %v335 = vunpack.c.l.b16 %v150
    %v336 = vunpack.c.h.b16 %v150
    %v337 = vunpack.c.l.b16 %v151
    %v338 = vunpack.c.h.b16 %v151
    %v339 = vunpack.c.l.b16 %v152
    %v340 = vunpack.c.h.b16 %v152
    %v341 = vunpack.c.l.b16 %v153
    %v342 = vunpack.c.h.b16 %v153
    %v343 = vunpack.c.l.b16 %v154
    %v344 = vunpack.c.h.b16 %v154
    %v345 = vunpack.c.l.b16 %v155
    %v346 = vunpack.c.h.b16 %v155
    %v347 = vunpack.c.l.b16 %v156
    %v348 = vunpack.c.h.b16 %v156
    %v349 = vunpack.c.l.b16 %v157
    %v350 = vunpack.c.h.b16 %v157
    %v351 = vunpack.c.l.b16 %v158
    %v352 = vunpack.c.h.b16 %v158
    %v353 = vunpack.c.l.b16 %v159
    %v354 = vunpack.c.h.b16 %v159
    %v355 = vunpack.c.l.b16 %v160
    %v356 = vunpack.c.h.b16 %v160
    %v357 = vunpack.c.l.b16 %v161
    %v358 = vunpack.c.h.b16 %v161
    %v359 = vunpack.c.l.b16 %v162
    %v360 = vunpack.c.h.b16 %v162
    %v361 = vpack.c.b16 %v235, %v233
    %v362 = vpack.c.b16 %v236, %v234
    %v363 = vpack.c.b16 %v239, %v237
    %v364 = vpack.c.b16 %v240, %v238
    %v365 = vpack.c.b16 %v243, %v241
    %v366 = vpack.c.b16 %v244, %v242
    %v367 = vpack.c.b16 %v247, %v245
    %v368 = vpack.c.b16 %v248, %v246
    %v369 = vpack.c.b16 %v251, %v249
    %v370 = vpack.c.b16 %v252, %v250
    %v371 = vpack.c.b16 %v255, %v253
    %v372 = vpack.c.b16 %v256, %v254
    %v373 = vpack.c.b16 %v259, %v257
    %v374 = vpack.c.b16 %v260, %v258
    %v375 = vpack.c.b16 %v263, %v261
    %v376 = vpack.c.b16 %v264, %v262
    %v377 = vpack.c.b16 %v267, %v265
    %v378 = vpack.c.b16 %v268, %v266
    %v379 = vpack.c.b16 %v271, %v269
    %v380 = vpack.c.b16 %v272, %v270
    %v381 = vpack.c.b16 %v275, %v273
    %v382 = vpack.c.b16 %v276, %v274
    %v383 = vpack.c.b16 %v279, %v277
    %v384 = vpack.c.b16 %v280, %v278
    %v385 = vpack.c.b16 %v283, %v281
    %v386 = vpack.c.b16 %v284, %v282
    %v387 = vpack.c.b16 %v287, %v285
    %v388 = vpack.c.b16 %v288, %v286
    %v389 = vpack.c.b16 %v291, %v289
    %v390 = vpack.c.b16 %v292, %v290
    %v391 = vpack.c.b16 %v295, %v293
    %v392 = vpack.c.b16 %v296, %v294
    %v393 = vpack.c.b16 %v299, %v297
    %v394 = vpack.c.b16 %v300, %v298
    %v395 = vpack.c.b16 %v303, %v301
    %v396 = vpack.c.b16 %v304, %v302
    %v397 = vpack.c.b16 %v307, %v305
    %v398 = vpack.c.b16 %v308, %v306
    %v399 = vpack.c.b16 %v311, %v309
    %v400 = vpack.c.b16 %v312, %v310
    %v401 = vpack.c.b16 %v315, %v313
    %v402 = vpack.c.b16 %v316, %v314
    %v403 = vpack.c.b16 %v319, %v317
    %v404 = vpack.c.b16 %v320, %v318
    %v405 = vpack.c.b16 %v323, %v321
    %v406 = vpack.c.b16 %v324, %v322
    %v407 = vpack.c.b16 %v327, %v325
    %v408 = vpack.c.b16 %v328, %v326
    %v409 = vpack.c.b16 %v331, %v329
    %v410 = vpack.c.b16 %v332, %v330
    %v411 = vpack.c.b16 %v335, %v333
    %v412 = vpack.c.b16 %v336, %v334
    %v413 = vpack.c.b16 %v339, %v337
    %v414 = vpack.c.b16 %v340, %v338
    %v415 = vpack.c.b16 %v343, %v341
    %v416 = vpack.c.b16 %v344, %v342
    %v417 = vpack.c.b16 %v347, %v345
    %v418 = vpack.c.b16 %v348, %v346
    %v419 = vpack.c.b16 %v351, %v349
    %v420 = vpack.c.b16 %v352, %v350
    %v421 = vpack.c.b16 %v355, %v353
    %v422 = vpack.c.b16 %v356, %v354
    %v423 = vpack.c.b16 %v359, %v357
    %v424 = vpack.c.b16 %v360, %v358
    %489 = vmatpush.bf16.msra.mxu0 %v375
    %490 = vmatpush.bf16.msra.mxu0 %v373
    %491 = vmatpush.bf16.msra.mxu0 %v371
    %492 = vmatpush.bf16.msra.mxu0 %v369
    %493 = vmatpush.bf16.msra.mxu0 %v367
    %494 = vmatpush.bf16.msra.mxu0 %v365
    %495 = vmatpush.bf16.msra.mxu0 %v363
    %496 = vmatpush.bf16.msra.mxu0 %v361
    %497 = vmatmul.bf16.gmra.mxu0 %v95
    %v498 = vpop.f32.mrf.mxu0
    %v499 = vadd.f32 %v165, %v498
    %v500 = vpop.f32.mrf.mxu0
    %501 = vdwg.mxu0
    %502 = vmatpush.bf16.msra.mxu0 %v391
    %503 = vmatpush.bf16.msra.mxu0 %v389
    %504 = vmatpush.bf16.msra.mxu0 %v387
    %505 = vmatpush.bf16.msra.mxu0 %v385
    %506 = vmatpush.bf16.msra.mxu0 %v383
    %507 = vmatpush.bf16.msra.mxu0 %v381
    %508 = vmatpush.bf16.msra.mxu0 %v379
    %509 = vmatpush.bf16.msra.mxu0 %v377
    %510 = vmatmul.bf16.gmra.mxu0 %v96
    %v511 = vpop.f32.mrf.mxu0
    %v512 = vadd.f32 %v499, %v511
    %v513 = vpop.f32.mrf.mxu0
    %514 = vdwg.mxu0
    %515 = vmatpush.bf16.msra.mxu0 %v407
    %516 = vmatpush.bf16.msra.mxu0 %v405
    %517 = vmatpush.bf16.msra.mxu0 %v403
    %518 = vmatpush.bf16.msra.mxu0 %v401
    %519 = vmatpush.bf16.msra.mxu0 %v399
    %520 = vmatpush.bf16.msra.mxu0 %v397
    %521 = vmatpush.bf16.msra.mxu0 %v395
    %522 = vmatpush.bf16.msra.mxu0 %v393
    %523 = vmatmul.bf16.gmra.mxu0 %v97
    %v524 = vpop.f32.mrf.mxu0
    %v525 = vadd.f32 %v512, %v524
    %v526 = vpop.f32.mrf.mxu0
    %527 = vdwg.mxu0
    %528 = vmatpush.bf16.msra.mxu0 %v423
    %529 = vmatpush.bf16.msra.mxu0 %v421
    %530 = vmatpush.bf16.msra.mxu0 %v419
    %531 = vmatpush.bf16.msra.mxu0 %v417
    %532 = vmatpush.bf16.msra.mxu0 %v415
    %533 = vmatpush.bf16.msra.mxu0 %v413
    %534 = vmatpush.bf16.msra.mxu0 %v411
    %535 = vmatpush.bf16.msra.mxu0 %v409
    %536 = vmatmul.bf16.gmra.mxu0 %v98
    %v537 = vpop.f32.mrf.mxu0
    %v538 = vadd.f32 %v525, %v537
    %v539 = vpop.f32.mrf.mxu0
    %540 = vdwg.mxu0
    %541 = vmatpush.bf16.msra.mxu0 %v376
    %542 = vmatpush.bf16.msra.mxu0 %v374
    %543 = vmatpush.bf16.msra.mxu0 %v372
    %544 = vmatpush.bf16.msra.mxu0 %v370
    %545 = vmatpush.bf16.msra.mxu0 %v368
    %546 = vmatpush.bf16.msra.mxu0 %v366
    %547 = vmatpush.bf16.msra.mxu0 %v364
    %548 = vmatpush.bf16.msra.mxu0 %v362
    %549 = vmatmul.bf16.gmra.mxu0 %v95
    %v550 = vpop.f32.mrf.mxu0
    %v551 = vadd.f32 %v166, %v550
    %v552 = vpop.f32.mrf.mxu0
    %553 = vdwg.mxu0
    %554 = vmatpush.bf16.msra.mxu0 %v392
    %555 = vmatpush.bf16.msra.mxu0 %v390
    %556 = vmatpush.bf16.msra.mxu0 %v388
    %557 = vmatpush.bf16.msra.mxu0 %v386
    %558 = vmatpush.bf16.msra.mxu0 %v384
    %559 = vmatpush.bf16.msra.mxu0 %v382
    %560 = vmatpush.bf16.msra.mxu0 %v380
    %561 = vmatpush.bf16.msra.mxu0 %v378
    %562 = vmatmul.bf16.gmra.mxu0 %v96
    %v563 = vpop.f32.mrf.mxu0
    %v564 = vadd.f32 %v551, %v563
    %v565 = vpop.f32.mrf.mxu0
    %566 = vdwg.mxu0
    %567 = vmatpush.bf16.msra.mxu0 %v408
    %568 = vmatpush.bf16.msra.mxu0 %v406
    %569 = vmatpush.bf16.msra.mxu0 %v404
    %570 = vmatpush.bf16.msra.mxu0 %v402
    %571 = vmatpush.bf16.msra.mxu0 %v400
    %572 = vmatpush.bf16.msra.mxu0 %v398
    %573 = vmatpush.bf16.msra.mxu0 %v396
    %574 = vmatpush.bf16.msra.mxu0 %v394
    %575 = vmatmul.bf16.gmra.mxu0 %v97
    %v576 = vpop.f32.mrf.mxu0
    %v577 = vadd.f32 %v564, %v576
    %v578 = vpop.f32.mrf.mxu0
    %579 = vdwg.mxu0
    %580 = vmatpush.bf16.msra.mxu0 %v424
    %581 = vmatpush.bf16.msra.mxu0 %v422
    %582 = vmatpush.bf16.msra.mxu0 %v420
    %583 = vmatpush.bf16.msra.mxu0 %v418
    %584 = vmatpush.bf16.msra.mxu0 %v416
    %585 = vmatpush.bf16.msra.mxu0 %v414
    %586 = vmatpush.bf16.msra.mxu0 %v412
    %587 = vmatpush.bf16.msra.mxu0 %v410
    %588 = vmatmul.bf16.gmra.mxu0 %v98
    %v589 = vpop.f32.mrf.mxu0
    %v590 = vadd.f32 %v577, %v589
    %v591 = vpop.f32.mrf.mxu0
    %592 = vdwg.mxu0
    %v593 = vmax.f32 %v538, 0.0
    %v594 = vmax.f32 %v590, 0.0
    %v595 = vpack.c.bf16 %v593, %v593
    %v596 = vpack.c.bf16 %v594, %v594
    %v597 = vld [vmem:[#allocation8] sm:$0xf]
    %v598 = vld [vmem:[#allocation8 + $0x4] sm:$0xf]
    %v599 = vld [vmem:[#allocation8 + $0x8] sm:$0xf]
    %v600 = vld [vmem:[#allocation8 + $0xc] sm:$0xf]
    %v601 = vld [vmem:[#allocation8 + $0x10] sm:$0xf]
    %v602 = vld [vmem:[#allocation8 + $0x14] sm:$0xf]
    %v603 = vld [vmem:[#allocation8 + $0x18] sm:$0xf]
    %v604 = vld [vmem:[#allocation8 + $0x1c] sm:$0xf]
    %v605 = vld [vmem:[#allocation8 + $0x20] sm:$0xf]
    %v606 = vld [vmem:[#allocation8 + $0x24] sm:$0xf]
    %v607 = vld [vmem:[#allocation8 + $0x28] sm:$0xf]
    %v608 = vld [vmem:[#allocation8 + $0x2c] sm:$0xf]
    %v609 = vld [vmem:[#allocation8 + $0x30] sm:$0xf]
    %v610 = vld [vmem:[#allocation8 + $0x34] sm:$0xf]
    %v611 = vld [vmem:[#allocation8 + $0x38] sm:$0xf]
    %v612 = vld [vmem:[#allocation8 + $0x3c] sm:$0xf]
    %v613 = vld [vmem:[#allocation8 + $0x40] sm:$0xf]
    %v614 = vld [vmem:[#allocation8 + $0x44] sm:$0xf]
    %v615 = vld [vmem:[#allocation8 + $0x48] sm:$0xf]
    %v616 = vld [vmem:[#allocation8 + $0x4c] sm:$0xf]
    %v617 = vld [vmem:[#allocation8 + $0x50] sm:$0xf]
    %v618 = vld [vmem:[#allocation8 + $0x54] sm:$0xf]
    %v619 = vld [vmem:[#allocation8 + $0x58] sm:$0xf]
    %v620 = vld [vmem:[#allocation8 + $0x5c] sm:$0xf]
    %v621 = vld [vmem:[#allocation8 + $0x60] sm:$0xf]
    %v622 = vld [vmem:[#allocation8 + $0x64] sm:$0xf]
    %v623 = vld [vmem:[#allocation8 + $0x68] sm:$0xf]
    %v624 = vld [vmem:[#allocation8 + $0x6c] sm:$0xf]
    %v625 = vld [vmem:[#allocation8 + $0x70] sm:$0xf]
    %v626 = vld [vmem:[#allocation8 + $0x74] sm:$0xf]
    %v627 = vld [vmem:[#allocation8 + $0x78] sm:$0xf]
    %v628 = vld [vmem:[#allocation8 + $0x7c] sm:$0xf]
    %v629 = vld [vmem:[%s4] sm:$0x1]
    %v631 = vperm.slane %v629, 0
    %v665 = vunpack.c.l.b16 %v597
    %v666 = vunpack.c.l.b16 %v598
    %v667 = vunpack.c.l.b16 %v599
    %v668 = vunpack.c.l.b16 %v600
    %v669 = vunpack.c.l.b16 %v601
    %v670 = vunpack.c.l.b16 %v602
    %v671 = vunpack.c.l.b16 %v603
    %v672 = vunpack.c.l.b16 %v604
    %v673 = vunpack.c.l.b16 %v605
    %v674 = vunpack.c.l.b16 %v606
    %v675 = vunpack.c.l.b16 %v607
    %v676 = vunpack.c.l.b16 %v608
    %v677 = vunpack.c.l.b16 %v609
    %v678 = vunpack.c.l.b16 %v610
    %v679 = vunpack.c.l.b16 %v611
    %v680 = vunpack.c.l.b16 %v612
    %v681 = vunpack.c.l.b16 %v613
    %v682 = vunpack.c.l.b16 %v614
    %v683 = vunpack.c.l.b16 %v615
    %v684 = vunpack.c.l.b16 %v616
    %v685 = vunpack.c.l.b16 %v617
    %v686 = vunpack.c.l.b16 %v618
    %v687 = vunpack.c.l.b16 %v619
    %v688 = vunpack.c.l.b16 %v620
    %v689 = vunpack.c.l.b16 %v621
    %v690 = vunpack.c.l.b16 %v622
    %v691 = vunpack.c.l.b16 %v623
    %v692 = vunpack.c.l.b16 %v624
    %v693 = vunpack.c.l.b16 %v625
    %v694 = vunpack.c.l.b16 %v626
    %v695 = vunpack.c.l.b16 %v627
    %v696 = vunpack.c.l.b16 %v628
    %v697 = vpack.c.b16 %v666, %v665
    %v698 = vpack.c.b16 %v668, %v667
    %v699 = vpack.c.b16 %v670, %v669
    %v700 = vpack.c.b16 %v672, %v671
    %v701 = vpack.c.b16 %v674, %v673
    %v702 = vpack.c.b16 %v676, %v675
    %v703 = vpack.c.b16 %v678, %v677
    %v704 = vpack.c.b16 %v680, %v679
    %v705 = vpack.c.b16 %v682, %v681
    %v706 = vpack.c.b16 %v684, %v683
    %v707 = vpack.c.b16 %v686, %v685
    %v708 = vpack.c.b16 %v688, %v687
    %v709 = vpack.c.b16 %v690, %v689
    %v710 = vpack.c.b16 %v692, %v691
    %v711 = vpack.c.b16 %v694, %v693
    %v712 = vpack.c.b16 %v696, %v695
    %729 = vmatpush.bf16.msra.mxu0 %v704
    %730 = vmatpush.bf16.msra.mxu0 %v703
    %731 = vmatpush.bf16.msra.mxu0 %v702
    %732 = vmatpush.bf16.msra.mxu0 %v701
    %733 = vmatpush.bf16.msra.mxu0 %v700
    %734 = vmatpush.bf16.msra.mxu0 %v699
    %735 = vmatpush.bf16.msra.mxu0 %v698
    %736 = vmatpush.bf16.msra.mxu0 %v697
    %737 = vmatmul.bf16.gmra.mxu0 %v595
    %v738 = vpop.f32.mrf.mxu0
    %v739 = vadd.f32 %v631, %v738
    %v740 = vpop.f32.mrf.mxu0
    %741 = vdwg.mxu0
    %742 = vmatpush.bf16.msra.mxu0 %v712
    %743 = vmatpush.bf16.msra.mxu0 %v711
    %744 = vmatpush.bf16.msra.mxu0 %v710
    %745 = vmatpush.bf16.msra.mxu0 %v709
    %746 = vmatpush.bf16.msra.mxu0 %v708
    %747 = vmatpush.bf16.msra.mxu0 %v707
    %748 = vmatpush.bf16.msra.mxu0 %v706
    %749 = vmatpush.bf16.msra.mxu0 %v705
    %750 = vmatmul.bf16.gmra.mxu0 %v596
    %v751 = vpop.f32.mrf.mxu0
    %v752 = vadd.f32 %v739, %v751
    %v753 = vpop.f32.mrf.mxu0
    %754 = vdwg.mxu0
    %vm755 = vcmask 1043456
    %v756 = vsel %vm755, %v752, -inf
    %757 = vmax.xlane.f32.xlu0 %v756
    %v758 = vpop.xlane.xlu0 %757
    %v759 = vsub.f32 %v752, %v758
    %v760 = vmul.f32 %v759, 1.442695
    %v761 = vpow.pop %v760
    %v762 = vsel %vm755, %v761, 0.0
    %763 = vadd.xlane.f32.xlu0 %v762
    %v764 = vpop.xlane.xlu0 %763
    %v765 = vrcp.pop %v764
    %v766 = vmul.f32 %v761, %v765
    %vm767 = vcmask 60416
    %768 = vst.msk [vmem:[#allocation10] sm:$0xf] %vm767, %v766
    // Predicated region
    $region38: #{tpu_custom_call.1} parent=1 // pred_check
      _
    $region39: #{tpu_custom_call.1} parent=1 // pred_check_branch
      %770 = sbr.rel (0) target = $region41
    $region40: #{tpu_custom_call.1} parent=1 // pred_region
      %772 = vsyncadd [#allocation4], 0
      %s774 = sshll.u32 [#allocation10], 4
      %s775 = int_to_ptr.vmem [resolvable:$true] %s774
      %s776 = sshll.u32 %s5, 4
      %s777 = int_to_ptr.hbm [resolvable:$true] %s776
      %779 = dma.vmem_to_hbm [thread:$0]  %s775, 64, %s777, [#allocation4]
    $region41: #{tpu_custom_call.1} parent=1 // pred_fallthru
      _
    // Predicated region
    $region42: #{tpu_custom_call.1} parent=1 // pred_check
      _
    $region43: #{tpu_custom_call.1} parent=1 // pred_check_branch
      %781 = sbr.rel (0) target = $region45
    $region44: #{tpu_custom_call.1} parent=1 // pred_region
      %783 = dma.done [#allocation4], 64
    $region45: #{tpu_custom_call.1} parent=1 // pred_fallthru
      _
    %784 = vsyncpa [#allocation3], 1
    %785 = vsyncpa [#allocation6], 1
    %786 = vsyncpa [#allocation9], 1
    %787 = vsyncpa [#allocation4], 1

</llo_original>
